<compile_context>
chip_gen: v6e
topology: v6e:2x2x1
jax: 0.10.0
libtpu: 0.0.40
codegen_flags: <defaults>
</compile_context>

<pallas_src>
import functools

import numpy as np
import jax
import jax.numpy as jnp
from jax.experimental import pallas as pl
from jax.experimental.pallas import tpu as pltpu

# ----------------------------- configuration -------------------------------
B, O, H = 2, 4, 16              # batch, num_objects, spatial size (even branch)
HIDDEN = (128, 128)             # hidden_dim (lane-aligned)
OUT_DIM = 32                    # output_dim (4*OUT_DIM = 128 -> lane-dense out)
LN_EPS = 1e-5                   # nn.LayerNorm default eps


def input_dim_from_shape(hh, hw):
    """Mirrors the in_dim computation in CubesEncoder_C4.__init__."""
    if hh % 2 == 0:
        return (hh // 2) * (hw // 2)
    return (hh - 1) // 2 * ((hw - 1) // 2 + 1) + 1


IN_DIM = input_dim_from_shape(H, H)


# --------------------- one-time setup (hoisted out of forward) -------------
def orbit_stack_indices(h):
    """Static gather table idx[g, orbit] -> flat spatial index, so that
    x.reshape(..., H*H)[..., idx] == orbit_stack(x) with shape [..., 4, n_orbits]."""
    coords = np.arange(h * h).reshape(h, h)
    rows = []
    if h % 2 == 1:
        c = (h - 1) // 2
        for i in range(4):
            rot = np.rot90(coords, i)
            rows.append(np.concatenate([[c * h + c], rot[:c, :c + 1].ravel()]))
    else:
        c = h // 2
        for i in range(4):
            rows.append(np.rot90(coords, i)[:c, :c].ravel())
    return jnp.asarray(np.stack(rows), dtype=jnp.int32)          # [4, n_orbits]


def pack_c4_weight_compact(w, dtype=jnp.bfloat16):
    """W[out, in, 4] -> compact Wc[in, 4*out] with Wc[i, k*out + j] = W[j, i, k]."""
    out_d, in_d, _ = w.shape
    return jnp.transpose(w, (1, 2, 0)).reshape(in_d, 4 * out_d).astype(dtype)


def pack_c4_weight_expanded(w, dtype=jnp.bfloat16):
    """W[out, in, 4] -> expanded We[h, in, g*out + j] = W[j, i, (h-g) % 4].
    Used for the last layer so the output lands lane-dense without lane shuffles."""
    out_d, in_d, _ = w.shape
    hh = np.arange(4)[:, None]
    gg = np.arange(4)[None, :]
    idx = jnp.asarray((hh - gg) % 4, dtype=jnp.int32)            # [4(h), 4(g)]
    we = w[:, :, idx]                                            # [j, i, h, g]
    we = jnp.transpose(we, (2, 1, 3, 0))                         # [h, i, g, j]
    return we.reshape(4, in_d, 4 * out_d).astype(dtype)


def prepare_params(params):
    """Pack/cast parameters once (NOT per forward call)."""
    w1, w2, w3, gamma, beta = params
    return (pack_c4_weight_compact(w1), pack_c4_weight_compact(w2),
            pack_c4_weight_expanded(w3),
            gamma.reshape(1, -1).astype(jnp.float32),
            beta.reshape(1, -1).astype(jnp.float32))


# ------------------------------ Pallas kernel ------------------------------
def encoder_kernel(x_ref, w1_ref, w2_ref, w3_ref, gamma_ref, beta_ref, o_ref,
                   *, tile, hd1, hd2, od):
    # x_ref:  [4, tile, in_dim] bf16   (input group h, sample n, orbit feature)
    # w1_ref: [in_dim, 4*hd1] bf16     compact
    # w2_ref: [hd1, 4*hd2]  bf16       compact
    # w3_ref: [4, hd2, 4*od] bf16      expanded (per input group)
    # o_ref:  [tile, 4*od] f32         column = g*od + j (lane-dense)

    # ---- fc1: per-group matmul against compact w1, shift/add combine, ReLU --
    p1 = [jnp.dot(x_ref[h], w1_ref[...], preferred_element_type=jnp.float32)
          for h in range(4)]                                   # 4 x [tile, 4*hd1]
    h1_blocks = []
    for g in range(4):
        acc = p1[g][:, 0:hd1]                                  # k = 0 term
        for k in range(1, 4):
            acc = acc + p1[(g + k) % 4][:, k * hd1:(k + 1) * hd1]
        h1_blocks.append(jnp.maximum(acc, 0.0))                # ReLU (values only)
    # group-major fold [4*tile, hd1]; f32 blocks are (8,128)-aligned, then one
    # whole-value bf16 cast feeding the fc2 MXU matmul (4*tile rows).
    h1 = jnp.concatenate(h1_blocks, axis=0).astype(jnp.bfloat16)

    # ---- fc2: single compact matmul (f32 accumulation kept for LN) ----------
    p2 = jnp.dot(h1, w2_ref[...], preferred_element_type=jnp.float32)  # [4T, 4*hd2]

    # gamma/beta broadcast hoisted out of the per-group loop
    gamma = jnp.broadcast_to(gamma_ref[...], (tile, hd2))
    beta = jnp.broadcast_to(beta_ref[...], (tile, hd2))

    # ---- per output group of fc2: combine -> LN (one-pass var) -> ReLU ->
    #      fc3 partial matmul with the expanded per-group weight -------------
    out = None
    for q in range(4):                      # q = fc2 output group = fc3 input group
        blk = p2[q * tile:(q + 1) * tile, 0:hd2]
        for k in range(1, 4):
            src = (q + k) % 4
            blk = blk + p2[src * tile:(src + 1) * tile, k * hd2:(k + 1) * hd2]
        mu = jnp.mean(blk, axis=-1, keepdims=True)
        ms = jnp.mean(blk * blk, axis=-1, keepdims=True)
        var = jnp.maximum(ms - mu * mu, 0.0)
        bn = (blk - mu) * jax.lax.rsqrt(var + LN_EPS)
        bn = jnp.maximum(bn * gamma + beta, 0.0).astype(jnp.bfloat16)
        part = jnp.dot(bn, w3_ref[q], preferred_element_type=jnp.float32)
        out = part if out is None else out + part
    o_ref[...] = out                         # [tile, 4*od], lane-dense


# ------------------------------- forward (JAX) ------------------------------
def _row_tiling(n):
    """Pad sample count to a sublane multiple and pick a per-step row tile.
    For large batches, tile=64 gives 4*64=256 MXU rows per step (v6e/v7x)."""
    if n <= 64:
        n_pad = ((n + 7) // 8) * 8
        return n_pad, n_pad
    tile = 64
    n_pad = ((n + tile - 1) // tile) * tile
    return n_pad, tile


@jax.jit
def cubes_encoder_c4(x, packed, orbit_idx):
    """x: [B, O, H, H] -> [B, O, 4, OUT_DIM]."""
    w1c, w2c, w3e, gamma, beta = packed
    b, o, hh, _ = x.shape
    n = b * o

    # orbit_stack as a single static gather, then group-major fold + bf16 cast.
    # allow_input_fusion lets XLA fuse these producers into the kernel's
    # input DMA instead of materializing an HBM intermediate.
    hf = jnp.take(x.reshape(b, o, hh * hh), orbit_idx, axis=-1)   # [B, O, 4, in]
    xg = jnp.transpose(hf, (2, 0, 1, 3)).reshape(4, n, -1).astype(jnp.bfloat16)

    in_dim = xg.shape[-1]
    hd1 = w1c.shape[-1] // 4
    hd2 = w2c.shape[-1] // 4
    od = w3e.shape[-1] // 4

    n_pad, tile = _row_tiling(n)
    if n_pad != n:
        xg = jnp.pad(xg, ((0, 0), (0, n_pad - n), (0, 0)))
    num_tiles = n_pad // tile

    flops = 2 * 4 * n_pad * (in_dim * 4 * hd1 + hd1 * 4 * hd2 + hd2 * 4 * od)
    bytes_accessed = (2 * (xg.size + w1c.size + w2c.size + w3e.size)
                      + 4 * (gamma.size + beta.size) + 4 * n_pad * 4 * od)

    kernel = functools.partial(encoder_kernel, tile=tile, hd1=hd1, hd2=hd2, od=od)
    y = pl.pallas_call(
        kernel,
        out_shape=jax.ShapeDtypeStruct((n_pad, 4 * od), jnp.float32),
        grid=(num_tiles,),
        in_specs=[
            pl.BlockSpec((4, tile, in_dim), lambda i: (0, i, 0)),      # x (row tile)
            pl.BlockSpec((in_dim, 4 * hd1), lambda i: (0, 0)),          # w1 (resident)
            pl.BlockSpec((hd1, 4 * hd2), lambda i: (0, 0)),             # w2 (resident)
            pl.BlockSpec((4, hd2, 4 * od), lambda i: (0, 0, 0)),        # w3 (resident)
            pl.BlockSpec((1, hd2), lambda i: (0, 0)),                   # gamma
            pl.BlockSpec((1, hd2), lambda i: (0, 0)),                   # beta
        ],
        out_specs=pl.BlockSpec((tile, 4 * od), lambda i: (i, 0)),
        compiler_params=pltpu.CompilerParams(
            dimension_semantics=("parallel",),
            allow_input_fusion=[True, False, False, False, False, False],
        ),
        cost_estimate=pl.CostEstimate(flops=flops, transcendentals=4 * n_pad,
                                      bytes_accessed=bytes_accessed),
    )(xg, w1c, w2c, w3e, gamma, beta)

    if n_pad != n:
        y = y[:n]
    return y.reshape(b, o, 4, od)


# ------------------------- pure-JAX reference path -------------------------
def orbit_stack_ref(x):
    """Reference rot90-based orbit_stack: [B,O,H,H] -> [B,O,4,n_orbits]."""
    b, o, hs, _ = x.shape
    if hs % 2 == 1:
        c = (hs - 1) // 2
        center = x[:, :, c, c]
        cols = []
        for i in range(4):
            xr = jnp.rot90(x, i, axes=(-2, -1))
            cols.append(xr[:, :, :c, :c + 1].reshape(b, o, -1))
        orbits = jnp.stack(cols, axis=-1)
        center4 = jnp.broadcast_to(center[:, :, None, None], (b, o, 1, 4))
        out = jnp.concatenate([center4, orbits], axis=2)
    else:
        c = hs // 2
        cols = []
        for i in range(4):
            xr = jnp.rot90(x, i, axes=(-2, -1))
            cols.append(xr[:, :, :c, :c].reshape(b, o, -1))
        out = jnp.stack(cols, axis=-1)
    return jnp.transpose(out, (0, 1, 3, 2))


def c4conv_ref(x, w):
    """x: [..., 4, in], w: [out, in, 4] -> [..., 4, out]."""
    ys = []
    for g in range(4):
        wg = jnp.roll(w, g, axis=-1)                 # wg[j,i,h] = W[j,i,(h-g)%4]
        ys.append(jnp.einsum('...hi,jih->...j', x, wg))
    return jnp.stack(ys, axis=-2)


def reference_forward(x, params):
    w1, w2, w3, gamma, beta = params
    h = orbit_stack_ref(x)
    h = jax.nn.relu(c4conv_ref(h, w1))
    h = c4conv_ref(h, w2)
    mu = h.mean(-1, keepdims=True)
    var = ((h - mu) ** 2).mean(-1, keepdims=True)
    h = (h - mu) / jnp.sqrt(var + LN_EPS) * gamma + beta
    h = jax.nn.relu(h)
    return c4conv_ref(h, w3)


# ----------------------------------- main -----------------------------------
if __name__ == "__main__":
    key = jax.random.PRNGKey(0)
    kx, k1, k2, k3 = jax.random.split(key, 4)

    x = jax.random.normal(kx, (B, O, H, H), dtype=jnp.float32)

    def init_w(k, out_d, in_d):
        bound = 1.0 / jnp.sqrt(jnp.float32(in_d * 4))
        return jax.random.uniform(k, (out_d, in_d, 4), jnp.float32, -bound, bound)

    w1 = init_w(k1, HIDDEN[0], IN_DIM)               # fc1.weights
    w2 = init_w(k2, HIDDEN[1], HIDDEN[0])            # fc2.weights
    w3 = init_w(k3, OUT_DIM, HIDDEN[1])              # fc3.weights
    gamma = jnp.ones((HIDDEN[1],), jnp.float32)      # ln.weight (default init)
    beta = jnp.zeros((HIDDEN[1],), jnp.float32)      # ln.bias   (default init)
    params = (w1, w2, w3, gamma, beta)

    packed = prepare_params(params)                  # hoisted: packed ONCE
    orbit_idx = orbit_stack_indices(H)               # static gather table, ONCE

    y = cubes_encoder_c4(x, packed, orbit_idx)
    jax.block_until_ready(y)

    y_ref = reference_forward(x, params)
    assert y.shape == (B, O, 4, OUT_DIM), y.shape
    if not jnp.allclose(y, y_ref, atol=5e-2, rtol=5e-2):
        raise SystemExit(
            f"mismatch: max abs diff {float(jnp.max(jnp.abs(y - y_ref)))}")

    print("KERNEL_OK")
</pallas_src>

<mosaic_0001>
module attributes {stable_mosaic.version = 11 : i64} {
  func.func @encoder_kernel(%arg0: i32, %arg1: memref<4x8x64xbf16, #tpu.memory_space<vmem>>, %arg2: memref<64x512xbf16, #tpu.memory_space<vmem>>, %arg3: memref<128x512xbf16, #tpu.memory_space<vmem>>, %arg4: memref<4x128x128xbf16, #tpu.memory_space<vmem>>, %arg5: memref<1x128xf32, #tpu.memory_space<vmem>>, %arg6: memref<1x128xf32, #tpu.memory_space<vmem>>, %arg7: memref<8x128xf32, #tpu.memory_space<vmem>>) attributes {dimension_semantics = [#tpu.dimension_semantics<parallel>], iteration_bounds = array<i64: 1>, scalar_prefetch = 0 : i64, scratch_operands = 0 : i64, tpu.core_type = #tpu.core_type<tc>, window_params = [{transform_indices = @transform_0, window_bounds = array<i64: 4, 8, 64>}, {pipeline_mode = #tpu.pipeline_mode<synchronous>, transform_indices = @transform_1, window_bounds = array<i64: 64, 512>}, {pipeline_mode = #tpu.pipeline_mode<synchronous>, transform_indices = @transform_2, window_bounds = array<i64: 128, 512>}, {pipeline_mode = #tpu.pipeline_mode<synchronous>, transform_indices = @transform_3, window_bounds = array<i64: 4, 128, 128>}, {pipeline_mode = #tpu.pipeline_mode<synchronous>, transform_indices = @transform_4, window_bounds = array<i64: 1, 128>}, {pipeline_mode = #tpu.pipeline_mode<synchronous>, transform_indices = @transform_5, window_bounds = array<i64: 1, 128>}, {transform_indices = @transform_6, window_bounds = array<i64: 8, 128>}]} {
    %c0 = arith.constant 0 : index
    %c0_0 = arith.constant 0 : index
    %c0_1 = arith.constant 0 : index
    %0 = vector.load %arg1[%c0, %c0_0, %c0_1] : memref<4x8x64xbf16, #tpu.memory_space<vmem>>, vector<1x8x64xbf16>
    %1 = vector.shape_cast %0 : vector<1x8x64xbf16> to vector<8x64xbf16>
    %c0_2 = arith.constant 0 : index
    %c0_3 = arith.constant 0 : index
    %2 = vector.load %arg2[%c0_2, %c0_3] : memref<64x512xbf16, #tpu.memory_space<vmem>>, vector<64x512xbf16>
    %cst = arith.constant dense<0.000000e+00> : vector<8x512xf32>
    %3 = tpu.matmul %1, %2, %cst {dimension_numbers = #tpu.dot_dimension_numbers<[1], [0], [0], [1], [0, 0, 1, 1], [], []>} : vector<8x64xbf16>, vector<64x512xbf16>, vector<8x512xf32> -> vector<8x512xf32>
    %c1 = arith.constant 1 : index
    %c0_4 = arith.constant 0 : index
    %c0_5 = arith.constant 0 : index
    %4 = vector.load %arg1[%c1, %c0_4, %c0_5] : memref<4x8x64xbf16, #tpu.memory_space<vmem>>, vector<1x8x64xbf16>
    %5 = vector.shape_cast %4 : vector<1x8x64xbf16> to vector<8x64xbf16>
    %c0_6 = arith.constant 0 : index
    %c0_7 = arith.constant 0 : index
    %6 = vector.load %arg2[%c0_6, %c0_7] : memref<64x512xbf16, #tpu.memory_space<vmem>>, vector<64x512xbf16>
    %cst_8 = arith.constant dense<0.000000e+00> : vector<8x512xf32>
    %7 = tpu.matmul %5, %6, %cst_8 {dimension_numbers = #tpu.dot_dimension_numbers<[1], [0], [0], [1], [0, 0, 1, 1], [], []>} : vector<8x64xbf16>, vector<64x512xbf16>, vector<8x512xf32> -> vector<8x512xf32>
    %c2 = arith.constant 2 : index
    %c0_9 = arith.constant 0 : index
    %c0_10 = arith.constant 0 : index
    %8 = vector.load %arg1[%c2, %c0_9, %c0_10] : memref<4x8x64xbf16, #tpu.memory_space<vmem>>, vector<1x8x64xbf16>
    %9 = vector.shape_cast %8 : vector<1x8x64xbf16> to vector<8x64xbf16>
    %c0_11 = arith.constant 0 : index
    %c0_12 = arith.constant 0 : index
    %10 = vector.load %arg2[%c0_11, %c0_12] : memref<64x512xbf16, #tpu.memory_space<vmem>>, vector<64x512xbf16>
    %cst_13 = arith.constant dense<0.000000e+00> : vector<8x512xf32>
    %11 = tpu.matmul %9, %10, %cst_13 {dimension_numbers = #tpu.dot_dimension_numbers<[1], [0], [0], [1], [0, 0, 1, 1], [], []>} : vector<8x64xbf16>, vector<64x512xbf16>, vector<8x512xf32> -> vector<8x512xf32>
    %c3 = arith.constant 3 : index
    %c0_14 = arith.constant 0 : index
    %c0_15 = arith.constant 0 : index
    %12 = vector.load %arg1[%c3, %c0_14, %c0_15] : memref<4x8x64xbf16, #tpu.memory_space<vmem>>, vector<1x8x64xbf16>
    %13 = vector.shape_cast %12 : vector<1x8x64xbf16> to vector<8x64xbf16>
    %c0_16 = arith.constant 0 : index
    %c0_17 = arith.constant 0 : index
    %14 = vector.load %arg2[%c0_16, %c0_17] : memref<64x512xbf16, #tpu.memory_space<vmem>>, vector<64x512xbf16>
    %cst_18 = arith.constant dense<0.000000e+00> : vector<8x512xf32>
    %15 = tpu.matmul %13, %14, %cst_18 {dimension_numbers = #tpu.dot_dimension_numbers<[1], [0], [0], [1], [0, 0, 1, 1], [], []>} : vector<8x64xbf16>, vector<64x512xbf16>, vector<8x512xf32> -> vector<8x512xf32>
    %16 = vector.extract_strided_slice %3 {offsets = [0, 0], sizes = [8, 128], strides = [1, 1]} : vector<8x512xf32> to vector<8x128xf32>
    %17 = vector.extract_strided_slice %7 {offsets = [0, 128], sizes = [8, 128], strides = [1, 1]} : vector<8x512xf32> to vector<8x128xf32>
    %18 = arith.addf %16, %17 : vector<8x128xf32>
    %19 = vector.extract_strided_slice %11 {offsets = [0, 256], sizes = [8, 128], strides = [1, 1]} : vector<8x512xf32> to vector<8x128xf32>
    %20 = arith.addf %18, %19 : vector<8x128xf32>
    %21 = vector.extract_strided_slice %15 {offsets = [0, 384], sizes = [8, 128], strides = [1, 1]} : vector<8x512xf32> to vector<8x128xf32>
    %22 = arith.addf %20, %21 : vector<8x128xf32>
    %cst_19 = arith.constant 0.000000e+00 : f32
    %23 = vector.broadcast %cst_19 : f32 to vector<8x128xf32>
    %24 = arith.maximumf %22, %23 : vector<8x128xf32>
    %25 = vector.extract_strided_slice %7 {offsets = [0, 0], sizes = [8, 128], strides = [1, 1]} : vector<8x512xf32> to vector<8x128xf32>
    %26 = vector.extract_strided_slice %11 {offsets = [0, 128], sizes = [8, 128], strides = [1, 1]} : vector<8x512xf32> to vector<8x128xf32>
    %27 = arith.addf %25, %26 : vector<8x128xf32>
    %28 = vector.extract_strided_slice %15 {offsets = [0, 256], sizes = [8, 128], strides = [1, 1]} : vector<8x512xf32> to vector<8x128xf32>
    %29 = arith.addf %27, %28 : vector<8x128xf32>
    %30 = vector.extract_strided_slice %3 {offsets = [0, 384], sizes = [8, 128], strides = [1, 1]} : vector<8x512xf32> to vector<8x128xf32>
    %31 = arith.addf %29, %30 : vector<8x128xf32>
    %cst_20 = arith.constant 0.000000e+00 : f32
    %32 = vector.broadcast %cst_20 : f32 to vector<8x128xf32>
    %33 = arith.maximumf %31, %32 : vector<8x128xf32>
    %34 = vector.extract_strided_slice %11 {offsets = [0, 0], sizes = [8, 128], strides = [1, 1]} : vector<8x512xf32> to vector<8x128xf32>
    %35 = vector.extract_strided_slice %15 {offsets = [0, 128], sizes = [8, 128], strides = [1, 1]} : vector<8x512xf32> to vector<8x128xf32>
    %36 = arith.addf %34, %35 : vector<8x128xf32>
    %37 = vector.extract_strided_slice %3 {offsets = [0, 256], sizes = [8, 128], strides = [1, 1]} : vector<8x512xf32> to vector<8x128xf32>
    %38 = arith.addf %36, %37 : vector<8x128xf32>
    %39 = vector.extract_strided_slice %7 {offsets = [0, 384], sizes = [8, 128], strides = [1, 1]} : vector<8x512xf32> to vector<8x128xf32>
    %40 = arith.addf %38, %39 : vector<8x128xf32>
    %cst_21 = arith.constant 0.000000e+00 : f32
    %41 = vector.broadcast %cst_21 : f32 to vector<8x128xf32>
    %42 = arith.maximumf %40, %41 : vector<8x128xf32>
    %43 = vector.extract_strided_slice %15 {offsets = [0, 0], sizes = [8, 128], strides = [1, 1]} : vector<8x512xf32> to vector<8x128xf32>
    %44 = vector.extract_strided_slice %3 {offsets = [0, 128], sizes = [8, 128], strides = [1, 1]} : vector<8x512xf32> to vector<8x128xf32>
    %45 = arith.addf %43, %44 : vector<8x128xf32>
    %46 = vector.extract_strided_slice %7 {offsets = [0, 256], sizes = [8, 128], strides = [1, 1]} : vector<8x512xf32> to vector<8x128xf32>
    %47 = arith.addf %45, %46 : vector<8x128xf32>
    %48 = vector.extract_strided_slice %11 {offsets = [0, 384], sizes = [8, 128], strides = [1, 1]} : vector<8x512xf32> to vector<8x128xf32>
    %49 = arith.addf %47, %48 : vector<8x128xf32>
    %cst_22 = arith.constant 0.000000e+00 : f32
    %50 = vector.broadcast %cst_22 : f32 to vector<8x128xf32>
    %51 = arith.maximumf %49, %50 : vector<8x128xf32>
    %52 = tpu.concatenate %24, %33, %42, %51 in 0 : vector<8x128xf32>, vector<8x128xf32>, vector<8x128xf32>, vector<8x128xf32> -> vector<32x128xf32>
    %53 = arith.truncf %52 : vector<32x128xf32> to vector<32x128xbf16>
    %c0_23 = arith.constant 0 : index
    %c0_24 = arith.constant 0 : index
    %54 = vector.load %arg3[%c0_23, %c0_24] : memref<128x512xbf16, #tpu.memory_space<vmem>>, vector<128x512xbf16>
    %cst_25 = arith.constant dense<0.000000e+00> : vector<32x512xf32>
    %55 = tpu.matmul %53, %54, %cst_25 {dimension_numbers = #tpu.dot_dimension_numbers<[1], [0], [0], [1], [0, 0, 1, 1], [], []>} : vector<32x128xbf16>, vector<128x512xbf16>, vector<32x512xf32> -> vector<32x512xf32>
    %c0_26 = arith.constant 0 : index
    %c0_27 = arith.constant 0 : index
    %56 = vector.load %arg5[%c0_26, %c0_27] : memref<1x128xf32, #tpu.memory_space<vmem>>, vector<1x128xf32>
    %57 = vector.shape_cast %56 : vector<1x128xf32> to vector<1x128xf32>
    %58 = vector.broadcast %57 : vector<1x128xf32> to vector<8x128xf32>
    %c0_28 = arith.constant 0 : index
    %c0_29 = arith.constant 0 : index
    %59 = vector.load %arg6[%c0_28, %c0_29] : memref<1x128xf32, #tpu.memory_space<vmem>>, vector<1x128xf32>
    %60 = vector.shape_cast %59 : vector<1x128xf32> to vector<1x128xf32>
    %61 = vector.broadcast %60 : vector<1x128xf32> to vector<8x128xf32>
    %62 = vector.extract_strided_slice %55 {offsets = [0, 0], sizes = [8, 128], strides = [1, 1]} : vector<32x512xf32> to vector<8x128xf32>
    %63 = vector.extract_strided_slice %55 {offsets = [8, 128], sizes = [8, 128], strides = [1, 1]} : vector<32x512xf32> to vector<8x128xf32>
    %64 = arith.addf %62, %63 : vector<8x128xf32>
    %65 = vector.extract_strided_slice %55 {offsets = [16, 256], sizes = [8, 128], strides = [1, 1]} : vector<32x512xf32> to vector<8x128xf32>
    %66 = arith.addf %64, %65 : vector<8x128xf32>
    %67 = vector.extract_strided_slice %55 {offsets = [24, 384], sizes = [8, 128], strides = [1, 1]} : vector<32x512xf32> to vector<8x128xf32>
    %68 = arith.addf %66, %67 : vector<8x128xf32>
    %cst_30 = arith.constant dense<0.000000e+00> : vector<8xf32>
    %69 = vector.multi_reduction <add>, %68, %cst_30 [1] : vector<8x128xf32> to vector<8xf32>
    %70 = vector.shape_cast %69 : vector<8xf32> to vector<8x1xf32>
    %cst_31 = arith.constant 1.280000e+02 : f32
    %71 = vector.broadcast %cst_31 : f32 to vector<8x1xf32>
    %72 = arith.divf %70, %71 : vector<8x1xf32>
    %73 = arith.mulf %68, %68 : vector<8x128xf32>
    %cst_32 = arith.constant dense<0.000000e+00> : vector<8xf32>
    %74 = vector.multi_reduction <add>, %73, %cst_32 [1] : vector<8x128xf32> to vector<8xf32>
    %75 = vector.shape_cast %74 : vector<8xf32> to vector<8x1xf32>
    %cst_33 = arith.constant 1.280000e+02 : f32
    %76 = vector.broadcast %cst_33 : f32 to vector<8x1xf32>
    %77 = arith.divf %75, %76 : vector<8x1xf32>
    %78 = arith.mulf %72, %72 : vector<8x1xf32>
    %79 = arith.subf %77, %78 : vector<8x1xf32>
    %cst_34 = arith.constant 0.000000e+00 : f32
    %80 = vector.broadcast %cst_34 : f32 to vector<8x1xf32>
    %81 = arith.maximumf %79, %80 : vector<8x1xf32>
    %82 = vector.broadcast %72 : vector<8x1xf32> to vector<8x128xf32>
    %83 = arith.subf %68, %82 : vector<8x128xf32>
    %cst_35 = arith.constant 9.99999974E-6 : f32
    %84 = vector.broadcast %cst_35 : f32 to vector<8x1xf32>
    %85 = arith.addf %81, %84 : vector<8x1xf32>
    %86 = math.rsqrt %85 : vector<8x1xf32>
    %87 = vector.broadcast %86 : vector<8x1xf32> to vector<8x128xf32>
    %88 = arith.mulf %83, %87 : vector<8x128xf32>
    %89 = arith.mulf %88, %58 : vector<8x128xf32>
    %90 = arith.addf %89, %61 : vector<8x128xf32>
    %cst_36 = arith.constant 0.000000e+00 : f32
    %91 = vector.broadcast %cst_36 : f32 to vector<8x128xf32>
    %92 = arith.maximumf %90, %91 : vector<8x128xf32>
    %93 = arith.truncf %92 : vector<8x128xf32> to vector<8x128xbf16>
    %c0_37 = arith.constant 0 : index
    %c0_38 = arith.constant 0 : index
    %c0_39 = arith.constant 0 : index
    %94 = vector.load %arg4[%c0_37, %c0_38, %c0_39] : memref<4x128x128xbf16, #tpu.memory_space<vmem>>, vector<1x128x128xbf16>
    %95 = vector.shape_cast %94 : vector<1x128x128xbf16> to vector<128x128xbf16>
    %cst_40 = arith.constant dense<0.000000e+00> : vector<8x128xf32>
    %96 = tpu.matmul %93, %95, %cst_40 {dimension_numbers = #tpu.dot_dimension_numbers<[1], [0], [0], [1], [0, 0, 1, 1], [], []>} : vector<8x128xbf16>, vector<128x128xbf16>, vector<8x128xf32> -> vector<8x128xf32>
    %97 = vector.extract_strided_slice %55 {offsets = [8, 0], sizes = [8, 128], strides = [1, 1]} : vector<32x512xf32> to vector<8x128xf32>
    %98 = vector.extract_strided_slice %55 {offsets = [16, 128], sizes = [8, 128], strides = [1, 1]} : vector<32x512xf32> to vector<8x128xf32>
    %99 = arith.addf %97, %98 : vector<8x128xf32>
    %100 = vector.extract_strided_slice %55 {offsets = [24, 256], sizes = [8, 128], strides = [1, 1]} : vector<32x512xf32> to vector<8x128xf32>
    %101 = arith.addf %99, %100 : vector<8x128xf32>
    %102 = vector.extract_strided_slice %55 {offsets = [0, 384], sizes = [8, 128], strides = [1, 1]} : vector<32x512xf32> to vector<8x128xf32>
    %103 = arith.addf %101, %102 : vector<8x128xf32>
    %cst_41 = arith.constant dense<0.000000e+00> : vector<8xf32>
    %104 = vector.multi_reduction <add>, %103, %cst_41 [1] : vector<8x128xf32> to vector<8xf32>
    %105 = vector.shape_cast %104 : vector<8xf32> to vector<8x1xf32>
    %cst_42 = arith.constant 1.280000e+02 : f32
    %106 = vector.broadcast %cst_42 : f32 to vector<8x1xf32>
    %107 = arith.divf %105, %106 : vector<8x1xf32>
    %108 = arith.mulf %103, %103 : vector<8x128xf32>
    %cst_43 = arith.constant dense<0.000000e+00> : vector<8xf32>
    %109 = vector.multi_reduction <add>, %108, %cst_43 [1] : vector<8x128xf32> to vector<8xf32>
    %110 = vector.shape_cast %109 : vector<8xf32> to vector<8x1xf32>
    %cst_44 = arith.constant 1.280000e+02 : f32
    %111 = vector.broadcast %cst_44 : f32 to vector<8x1xf32>
    %112 = arith.divf %110, %111 : vector<8x1xf32>
    %113 = arith.mulf %107, %107 : vector<8x1xf32>
    %114 = arith.subf %112, %113 : vector<8x1xf32>
    %cst_45 = arith.constant 0.000000e+00 : f32
    %115 = vector.broadcast %cst_45 : f32 to vector<8x1xf32>
    %116 = arith.maximumf %114, %115 : vector<8x1xf32>
    %117 = vector.broadcast %107 : vector<8x1xf32> to vector<8x128xf32>
    %118 = arith.subf %103, %117 : vector<8x128xf32>
    %cst_46 = arith.constant 9.99999974E-6 : f32
    %119 = vector.broadcast %cst_46 : f32 to vector<8x1xf32>
    %120 = arith.addf %116, %119 : vector<8x1xf32>
    %121 = math.rsqrt %120 : vector<8x1xf32>
    %122 = vector.broadcast %121 : vector<8x1xf32> to vector<8x128xf32>
    %123 = arith.mulf %118, %122 : vector<8x128xf32>
    %124 = arith.mulf %123, %58 : vector<8x128xf32>
    %125 = arith.addf %124, %61 : vector<8x128xf32>
    %cst_47 = arith.constant 0.000000e+00 : f32
    %126 = vector.broadcast %cst_47 : f32 to vector<8x128xf32>
    %127 = arith.maximumf %125, %126 : vector<8x128xf32>
    %128 = arith.truncf %127 : vector<8x128xf32> to vector<8x128xbf16>
    %c1_48 = arith.constant 1 : index
    %c0_49 = arith.constant 0 : index
    %c0_50 = arith.constant 0 : index
    %129 = vector.load %arg4[%c1_48, %c0_49, %c0_50] : memref<4x128x128xbf16, #tpu.memory_space<vmem>>, vector<1x128x128xbf16>
    %130 = vector.shape_cast %129 : vector<1x128x128xbf16> to vector<128x128xbf16>
    %cst_51 = arith.constant dense<0.000000e+00> : vector<8x128xf32>
    %131 = tpu.matmul %128, %130, %cst_51 {dimension_numbers = #tpu.dot_dimension_numbers<[1], [0], [0], [1], [0, 0, 1, 1], [], []>} : vector<8x128xbf16>, vector<128x128xbf16>, vector<8x128xf32> -> vector<8x128xf32>
    %132 = arith.addf %96, %131 : vector<8x128xf32>
    %133 = vector.extract_strided_slice %55 {offsets = [16, 0], sizes = [8, 128], strides = [1, 1]} : vector<32x512xf32> to vector<8x128xf32>
    %134 = vector.extract_strided_slice %55 {offsets = [24, 128], sizes = [8, 128], strides = [1, 1]} : vector<32x512xf32> to vector<8x128xf32>
    %135 = arith.addf %133, %134 : vector<8x128xf32>
    %136 = vector.extract_strided_slice %55 {offsets = [0, 256], sizes = [8, 128], strides = [1, 1]} : vector<32x512xf32> to vector<8x128xf32>
    %137 = arith.addf %135, %136 : vector<8x128xf32>
    %138 = vector.extract_strided_slice %55 {offsets = [8, 384], sizes = [8, 128], strides = [1, 1]} : vector<32x512xf32> to vector<8x128xf32>
    %139 = arith.addf %137, %138 : vector<8x128xf32>
    %cst_52 = arith.constant dense<0.000000e+00> : vector<8xf32>
    %140 = vector.multi_reduction <add>, %139, %cst_52 [1] : vector<8x128xf32> to vector<8xf32>
    %141 = vector.shape_cast %140 : vector<8xf32> to vector<8x1xf32>
    %cst_53 = arith.constant 1.280000e+02 : f32
    %142 = vector.broadcast %cst_53 : f32 to vector<8x1xf32>
    %143 = arith.divf %141, %142 : vector<8x1xf32>
    %144 = arith.mulf %139, %139 : vector<8x128xf32>
    %cst_54 = arith.constant dense<0.000000e+00> : vector<8xf32>
    %145 = vector.multi_reduction <add>, %144, %cst_54 [1] : vector<8x128xf32> to vector<8xf32>
    %146 = vector.shape_cast %145 : vector<8xf32> to vector<8x1xf32>
    %cst_55 = arith.constant 1.280000e+02 : f32
    %147 = vector.broadcast %cst_55 : f32 to vector<8x1xf32>
    %148 = arith.divf %146, %147 : vector<8x1xf32>
    %149 = arith.mulf %143, %143 : vector<8x1xf32>
    %150 = arith.subf %148, %149 : vector<8x1xf32>
    %cst_56 = arith.constant 0.000000e+00 : f32
    %151 = vector.broadcast %cst_56 : f32 to vector<8x1xf32>
    %152 = arith.maximumf %150, %151 : vector<8x1xf32>
    %153 = vector.broadcast %143 : vector<8x1xf32> to vector<8x128xf32>
    %154 = arith.subf %139, %153 : vector<8x128xf32>
    %cst_57 = arith.constant 9.99999974E-6 : f32
    %155 = vector.broadcast %cst_57 : f32 to vector<8x1xf32>
    %156 = arith.addf %152, %155 : vector<8x1xf32>
    %157 = math.rsqrt %156 : vector<8x1xf32>
    %158 = vector.broadcast %157 : vector<8x1xf32> to vector<8x128xf32>
    %159 = arith.mulf %154, %158 : vector<8x128xf32>
    %160 = arith.mulf %159, %58 : vector<8x128xf32>
    %161 = arith.addf %160, %61 : vector<8x128xf32>
    %cst_58 = arith.constant 0.000000e+00 : f32
    %162 = vector.broadcast %cst_58 : f32 to vector<8x128xf32>
    %163 = arith.maximumf %161, %162 : vector<8x128xf32>
    %164 = arith.truncf %163 : vector<8x128xf32> to vector<8x128xbf16>
    %c2_59 = arith.constant 2 : index
    %c0_60 = arith.constant 0 : index
    %c0_61 = arith.constant 0 : index
    %165 = vector.load %arg4[%c2_59, %c0_60, %c0_61] : memref<4x128x128xbf16, #tpu.memory_space<vmem>>, vector<1x128x128xbf16>
    %166 = vector.shape_cast %165 : vector<1x128x128xbf16> to vector<128x128xbf16>
    %cst_62 = arith.constant dense<0.000000e+00> : vector<8x128xf32>
    %167 = tpu.matmul %164, %166, %cst_62 {dimension_numbers = #tpu.dot_dimension_numbers<[1], [0], [0], [1], [0, 0, 1, 1], [], []>} : vector<8x128xbf16>, vector<128x128xbf16>, vector<8x128xf32> -> vector<8x128xf32>
    %168 = arith.addf %132, %167 : vector<8x128xf32>
    %169 = vector.extract_strided_slice %55 {offsets = [24, 0], sizes = [8, 128], strides = [1, 1]} : vector<32x512xf32> to vector<8x128xf32>
    %170 = vector.extract_strided_slice %55 {offsets = [0, 128], sizes = [8, 128], strides = [1, 1]} : vector<32x512xf32> to vector<8x128xf32>
    %171 = arith.addf %169, %170 : vector<8x128xf32>
    %172 = vector.extract_strided_slice %55 {offsets = [8, 256], sizes = [8, 128], strides = [1, 1]} : vector<32x512xf32> to vector<8x128xf32>
    %173 = arith.addf %171, %172 : vector<8x128xf32>
    %174 = vector.extract_strided_slice %55 {offsets = [16, 384], sizes = [8, 128], strides = [1, 1]} : vector<32x512xf32> to vector<8x128xf32>
    %175 = arith.addf %173, %174 : vector<8x128xf32>
    %cst_63 = arith.constant dense<0.000000e+00> : vector<8xf32>
    %176 = vector.multi_reduction <add>, %175, %cst_63 [1] : vector<8x128xf32> to vector<8xf32>
    %177 = vector.shape_cast %176 : vector<8xf32> to vector<8x1xf32>
    %cst_64 = arith.constant 1.280000e+02 : f32
    %178 = vector.broadcast %cst_64 : f32 to vector<8x1xf32>
    %179 = arith.divf %177, %178 : vector<8x1xf32>
    %180 = arith.mulf %175, %175 : vector<8x128xf32>
    %cst_65 = arith.constant dense<0.000000e+00> : vector<8xf32>
    %181 = vector.multi_reduction <add>, %180, %cst_65 [1] : vector<8x128xf32> to vector<8xf32>
    %182 = vector.shape_cast %181 : vector<8xf32> to vector<8x1xf32>
    %cst_66 = arith.constant 1.280000e+02 : f32
    %183 = vector.broadcast %cst_66 : f32 to vector<8x1xf32>
    %184 = arith.divf %182, %183 : vector<8x1xf32>
    %185 = arith.mulf %179, %179 : vector<8x1xf32>
    %186 = arith.subf %184, %185 : vector<8x1xf32>
    %cst_67 = arith.constant 0.000000e+00 : f32
    %187 = vector.broadcast %cst_67 : f32 to vector<8x1xf32>
    %188 = arith.maximumf %186, %187 : vector<8x1xf32>
    %189 = vector.broadcast %179 : vector<8x1xf32> to vector<8x128xf32>
    %190 = arith.subf %175, %189 : vector<8x128xf32>
    %cst_68 = arith.constant 9.99999974E-6 : f32
    %191 = vector.broadcast %cst_68 : f32 to vector<8x1xf32>
    %192 = arith.addf %188, %191 : vector<8x1xf32>
    %193 = math.rsqrt %192 : vector<8x1xf32>
    %194 = vector.broadcast %193 : vector<8x1xf32> to vector<8x128xf32>
    %195 = arith.mulf %190, %194 : vector<8x128xf32>
    %196 = arith.mulf %195, %58 : vector<8x128xf32>
    %197 = arith.addf %196, %61 : vector<8x128xf32>
    %cst_69 = arith.constant 0.000000e+00 : f32
    %198 = vector.broadcast %cst_69 : f32 to vector<8x128xf32>
    %199 = arith.maximumf %197, %198 : vector<8x128xf32>
    %200 = arith.truncf %199 : vector<8x128xf32> to vector<8x128xbf16>
    %c3_70 = arith.constant 3 : index
    %c0_71 = arith.constant 0 : index
    %c0_72 = arith.constant 0 : index
    %201 = vector.load %arg4[%c3_70, %c0_71, %c0_72] : memref<4x128x128xbf16, #tpu.memory_space<vmem>>, vector<1x128x128xbf16>
    %202 = vector.shape_cast %201 : vector<1x128x128xbf16> to vector<128x128xbf16>
    %cst_73 = arith.constant dense<0.000000e+00> : vector<8x128xf32>
    %203 = tpu.matmul %200, %202, %cst_73 {dimension_numbers = #tpu.dot_dimension_numbers<[1], [0], [0], [1], [0, 0, 1, 1], [], []>} : vector<8x128xbf16>, vector<128x128xbf16>, vector<8x128xf32> -> vector<8x128xf32>
    %204 = arith.addf %168, %203 : vector<8x128xf32>
    %c0_74 = arith.constant 0 : index
    %c0_75 = arith.constant 0 : index
    %205 = vector.load %arg7[%c0_74, %c0_75] : memref<8x128xf32, #tpu.memory_space<vmem>>, vector<8x128xf32>
    tpu.vector_store %arg7[%c0_74, %c0_75], %204 {strides = array<i32>} : memref<8x128xf32, #tpu.memory_space<vmem>>, vector<8x128xf32>,
    return
  }
  func.func @transform_0(%arg0: i32) -> (i32, i32, i32) {
    %c0_i32 = arith.constant 0 : i32
    %c0_i32_0 = arith.constant 0 : i32
    %c0_i32_1 = arith.constant 0 : i32
    return %c0_i32, %arg0, %c0_i32_0 : i32, i32, i32
  }
  func.func @transform_1(%arg0: i32) -> (i32, i32) {
    %c0_i32 = arith.constant 0 : i32
    %c0_i32_0 = arith.constant 0 : i32
    %c0_i32_1 = arith.constant 0 : i32
    return %c0_i32, %c0_i32_0 : i32, i32
  }
  func.func @transform_2(%arg0: i32) -> (i32, i32) {
    %c0_i32 = arith.constant 0 : i32
    %c0_i32_0 = arith.constant 0 : i32
    %c0_i32_1 = arith.constant 0 : i32
    return %c0_i32, %c0_i32_0 : i32, i32
  }
  func.func @transform_3(%arg0: i32) -> (i32, i32, i32) {
    %c0_i32 = arith.constant 0 : i32
    %c0_i32_0 = arith.constant 0 : i32
    %c0_i32_1 = arith.constant 0 : i32
    %c0_i32_2 = arith.constant 0 : i32
    return %c0_i32, %c0_i32_0, %c0_i32_1 : i32, i32, i32
  }
  func.func @transform_4(%arg0: i32) -> (i32, i32) {
    %c0_i32 = arith.constant 0 : i32
    %c0_i32_0 = arith.constant 0 : i32
    %c0_i32_1 = arith.constant 0 : i32
    return %c0_i32, %c0_i32_0 : i32, i32
  }
  func.func @transform_5(%arg0: i32) -> (i32, i32) {
    %c0_i32 = arith.constant 0 : i32
    %c0_i32_0 = arith.constant 0 : i32
    %c0_i32_1 = arith.constant 0 : i32
    return %c0_i32, %c0_i32_0 : i32, i32
  }
  func.func @transform_6(%arg0: i32) -> (i32, i32) {
    %c0_i32 = arith.constant 0 : i32
    %c0_i32_0 = arith.constant 0 : i32
    return %arg0, %c0_i32 : i32, i32
  }
}

</mosaic_0001>

<llo_original>
// kernel: cubes_encoder_c4.1
$region0: #{cubes_encoder_c4.1}
  #allocation0 [shape = 'u32[]', space=smem, size = 0x4, offset = 0x4, fixed_abs, tag = 'smem constant byte address 0x4 - core index']
  #allocation1 [shape = 'u32[144,128]{1,0:T(1,128)}', space=vmem, size = 0x12000, scoped, tag = 'internal scratch']
  %s0 = inlined_call_operand.vmem [shape: bf16[4,8,64], index: 0, kind: input, shape index: {}]
  %s1 = inlined_call_operand.vmem [shape: bf16[64,512], index: 1, kind: input, shape index: {}]
  %s2 = inlined_call_operand.vmem [shape: bf16[128,512], index: 2, kind: input, shape index: {}]
  %s3 = inlined_call_operand.vmem [shape: bf16[4,128,128], index: 3, kind: input, shape index: {}]
  %s4 = inlined_call_operand.vmem [shape: f32[1,128], index: 4, kind: input, shape index: {}]
  %s5 = inlined_call_operand.vmem [shape: f32[1,128], index: 5, kind: input, shape index: {}]
  %s6 = inlined_call_operand.vmem [shape: f32[8,128], index: 6, kind: output, shape index: {}]
  %s7 = sld [smem:[#allocation0]]
  $region34: #{cubes_encoder_c4.1} parent=0
    _
  %s9 = ssub.s32 1, %s7
  %s10 = scalar_select 0, %s9, %s7
  // Predicated region
  $region2: #{cubes_encoder_c4.1} parent=0 // pred_check
    _
  $region3: #{cubes_encoder_c4.1} parent=0 // pred_check_branch
    %12 = sbr.rel (0) target = $region5
  $region4: #{cubes_encoder_c4.1} parent=0 // pred_region
    _
  $region5: #{cubes_encoder_c4.1} parent=0 // pred_fallthru
    _
  // Predicated region
  $region6: #{cubes_encoder_c4.1} parent=0 // pred_check
    _
  $region7: #{cubes_encoder_c4.1} parent=0 // pred_check_branch
    %14 = sbr.rel (0) target = $region9
  $region8: #{cubes_encoder_c4.1} parent=0 // pred_region
    _
  $region9: #{cubes_encoder_c4.1} parent=0 // pred_fallthru
    _
  // Predicated region
  $region10: #{cubes_encoder_c4.1} parent=0 // pred_check
    _
  $region11: #{cubes_encoder_c4.1} parent=0 // pred_check_branch
    %16 = sbr.rel (0) target = $region13
  $region12: #{cubes_encoder_c4.1} parent=0 // pred_region
    _
  $region13: #{cubes_encoder_c4.1} parent=0 // pred_fallthru
    _
  // Predicated region
  $region14: #{cubes_encoder_c4.1} parent=0 // pred_check
    _
  $region15: #{cubes_encoder_c4.1} parent=0 // pred_check_branch
    %18 = sbr.rel (0) target = $region17
  $region16: #{cubes_encoder_c4.1} parent=0 // pred_region
    _
  $region17: #{cubes_encoder_c4.1} parent=0 // pred_fallthru
    _
  // Predicated region
  $region18: #{cubes_encoder_c4.1} parent=0 // pred_check
    _
  $region19: #{cubes_encoder_c4.1} parent=0 // pred_check_branch
    %20 = sbr.rel (0) target = $region21
  $region20: #{cubes_encoder_c4.1} parent=0 // pred_region
    _
  $region21: #{cubes_encoder_c4.1} parent=0 // pred_fallthru
    _
  // Predicated region
  $region22: #{cubes_encoder_c4.1} parent=0 // pred_check
    _
  $region23: #{cubes_encoder_c4.1} parent=0 // pred_check_branch
    %22 = sbr.rel (0) target = $region25
  $region24: #{cubes_encoder_c4.1} parent=0 // pred_region
    _
  $region25: #{cubes_encoder_c4.1} parent=0 // pred_fallthru
    _
  %v24 = vld [vmem:[%s0] sm:$0xf]
  %v25 = vld [vmem:[%s1] sm:$0xff]
  %v26 = vld [vmem:[%s1 + $0x8] sm:$0xff]
  %v27 = vld [vmem:[%s1 + $0x10] sm:$0xff]
  %v28 = vld [vmem:[%s1 + $0x18] sm:$0xff]
  %v29 = vld [vmem:[%s1 + $0x20] sm:$0xff]
  %v30 = vld [vmem:[%s1 + $0x28] sm:$0xff]
  %v31 = vld [vmem:[%s1 + $0x30] sm:$0xff]
  %v32 = vld [vmem:[%s1 + $0x38] sm:$0xff]
  %v33 = vld [vmem:[%s1 + $0x40] sm:$0xff]
  %v34 = vld [vmem:[%s1 + $0x48] sm:$0xff]
  %v35 = vld [vmem:[%s1 + $0x50] sm:$0xff]
  %v36 = vld [vmem:[%s1 + $0x58] sm:$0xff]
  %v37 = vld [vmem:[%s1 + $0x60] sm:$0xff]
  %v38 = vld [vmem:[%s1 + $0x68] sm:$0xff]
  %v39 = vld [vmem:[%s1 + $0x70] sm:$0xff]
  %v40 = vld [vmem:[%s1 + $0x78] sm:$0xff]
  %v57 = vunpack.c.l.b16 %v25
  %v58 = vunpack.c.h.b16 %v25
  %v59 = vunpack.c.l.b16 %v26
  %v60 = vunpack.c.h.b16 %v26
  %v61 = vunpack.c.l.b16 %v27
  %v62 = vunpack.c.h.b16 %v27
  %v63 = vunpack.c.l.b16 %v28
  %v64 = vunpack.c.h.b16 %v28
  %v65 = vunpack.c.l.b16 %v29
  %v66 = vunpack.c.h.b16 %v29
  %v67 = vunpack.c.l.b16 %v30
  %v68 = vunpack.c.h.b16 %v30
  %v69 = vunpack.c.l.b16 %v31
  %v70 = vunpack.c.h.b16 %v31
  %v71 = vunpack.c.l.b16 %v32
  %v72 = vunpack.c.h.b16 %v32
  %v73 = vunpack.c.l.b16 %v33
  %v74 = vunpack.c.h.b16 %v33
  %v75 = vunpack.c.l.b16 %v34
  %v76 = vunpack.c.h.b16 %v34
  %v77 = vunpack.c.l.b16 %v35
  %v78 = vunpack.c.h.b16 %v35
  %v79 = vunpack.c.l.b16 %v36
  %v80 = vunpack.c.h.b16 %v36
  %v81 = vunpack.c.l.b16 %v37
  %v82 = vunpack.c.h.b16 %v37
  %v83 = vunpack.c.l.b16 %v38
  %v84 = vunpack.c.h.b16 %v38
  %v85 = vunpack.c.l.b16 %v39
  %v86 = vunpack.c.h.b16 %v39
  %v87 = vunpack.c.l.b16 %v40
  %v88 = vunpack.c.h.b16 %v40
  %v89 = vpack.c.b16 %v61, %v57
  %v90 = vpack.c.b16 %v62, %v58
  %v91 = vpack.c.b16 %v63, %v59
  %v92 = vpack.c.b16 %v64, %v60
  %v93 = vpack.c.b16 %v69, %v65
  %v94 = vpack.c.b16 %v70, %v66
  %v95 = vpack.c.b16 %v71, %v67
  %v96 = vpack.c.b16 %v72, %v68
  %v97 = vpack.c.b16 %v77, %v73
  %v98 = vpack.c.b16 %v78, %v74
  %v99 = vpack.c.b16 %v79, %v75
  %v100 = vpack.c.b16 %v80, %v76
  %v101 = vpack.c.b16 %v85, %v81
  %v102 = vpack.c.b16 %v86, %v82
  %v103 = vpack.c.b16 %v87, %v83
  %v104 = vpack.c.b16 %v88, %v84
  %vm121 = vcmask 523264
  %v123 = vsel %vm121, %v24, 0
  %125 = vmatprep.subr.bf16.mxu0 0
  %126 = vmatpush1.bf16.msra.mxu0 0
  %127 = vmatprep.subr.bf16.mxu0 0
  %128 = vmatpush1.bf16.msra.mxu0 0
  %129 = vmatprep.subr.bf16.mxu0 0
  %130 = vmatpush1.bf16.msra.mxu0 0
  %131 = vmatprep.subr.bf16.mxu0 0
  %132 = vmatpush1.bf16.msra.mxu0 0
  %133 = vmatprep.subr.bf16.mxu0 %v102
  %134 = vmatpush1.bf16.msra.mxu0 %v101
  %135 = vmatprep.subr.bf16.mxu0 %v98
  %136 = vmatpush1.bf16.msra.mxu0 %v97
  %137 = vmatprep.subr.bf16.mxu0 %v94
  %138 = vmatpush1.bf16.msra.mxu0 %v93
  %139 = vmatprep.subr.bf16.mxu0 %v90
  %140 = vmatpush1.bf16.msra.mxu0 %v89
  %141 = vmatprep.subr.bf16.mxu0 0
  %142 = vmatpush2.bf16.msra.mxu0 0
  %143 = vmatprep.subr.bf16.mxu0 0
  %144 = vmatpush2.bf16.msra.mxu0 0
  %145 = vmatprep.subr.bf16.mxu0 0
  %146 = vmatpush2.bf16.msra.mxu0 0
  %147 = vmatprep.subr.bf16.mxu0 0
  %148 = vmatpush2.bf16.msra.mxu0 0
  %149 = vmatprep.subr.bf16.mxu0 0
  %150 = vmatpush2.bf16.msra.mxu0 0
  %151 = vmatprep.subr.bf16.mxu0 0
  %152 = vmatpush2.bf16.msra.mxu0 0
  %153 = vmatprep.subr.bf16.mxu0 0
  %154 = vmatpush2.bf16.msra.mxu0 0
  %155 = vmatprep.subr.bf16.mxu0 0
  %156 = vmatpush2.bf16.msra.mxu0 0
  %157 = vmatprep.mubr.bf16.mxu0 0
  %158 = vmatmul.mubr.bf16.gmra.mxu0 %v123
  %v159 = vpop.f32.mrf.mxu0
  %v160 = vadd.f32 0.0, %v159
  %v161 = vpop.f32.mrf.mxu0
  %v162 = vadd.f32 0.0, %v161
  %v163 = vpop.f32.mrf.mxu0
  %v164 = vpop.f32.mrf.mxu0
  %165 = vdwg.mxu0
  %166 = vmatprep.subr.bf16.mxu0 0
  %167 = vmatpush1.bf16.msra.mxu0 0
  %168 = vmatprep.subr.bf16.mxu0 0
  %169 = vmatpush1.bf16.msra.mxu0 0
  %170 = vmatprep.subr.bf16.mxu0 0
  %171 = vmatpush1.bf16.msra.mxu0 0
  %172 = vmatprep.subr.bf16.mxu0 0
  %173 = vmatpush1.bf16.msra.mxu0 0
  %174 = vmatprep.subr.bf16.mxu0 %v104
  %175 = vmatpush1.bf16.msra.mxu0 %v103
  %176 = vmatprep.subr.bf16.mxu0 %v100
  %177 = vmatpush1.bf16.msra.mxu0 %v99
  %178 = vmatprep.subr.bf16.mxu0 %v96
  %179 = vmatpush1.bf16.msra.mxu0 %v95
  %180 = vmatprep.subr.bf16.mxu0 %v92
  %181 = vmatpush1.bf16.msra.mxu0 %v91
  %182 = vmatprep.subr.bf16.mxu0 0
  %183 = vmatpush2.bf16.msra.mxu0 0
  %184 = vmatprep.subr.bf16.mxu0 0
  %185 = vmatpush2.bf16.msra.mxu0 0
  %186 = vmatprep.subr.bf16.mxu0 0
  %187 = vmatpush2.bf16.msra.mxu0 0
  %188 = vmatprep.subr.bf16.mxu0 0
  %189 = vmatpush2.bf16.msra.mxu0 0
  %190 = vmatprep.subr.bf16.mxu0 0
  %191 = vmatpush2.bf16.msra.mxu0 0
  %192 = vmatprep.subr.bf16.mxu0 0
  %193 = vmatpush2.bf16.msra.mxu0 0
  %194 = vmatprep.subr.bf16.mxu0 0
  %195 = vmatpush2.bf16.msra.mxu0 0
  %196 = vmatprep.subr.bf16.mxu0 0
  %197 = vmatpush2.bf16.msra.mxu0 0
  %198 = vmatprep.mubr.bf16.mxu0 0
  %199 = vmatmul.mubr.bf16.gmra.mxu0 %v123
  %v200 = vpop.f32.mrf.mxu0
  %v201 = vadd.f32 0.0, %v200
  %v202 = vpop.f32.mrf.mxu0
  %v203 = vadd.f32 0.0, %v202
  %v204 = vpop.f32.mrf.mxu0
  %v205 = vpop.f32.mrf.mxu0
  %206 = vdwg.mxu0
  %s207 = scalar_lea.vmem %s0, 4
  %v208 = vld [vmem:[%s207] sm:$0xf]
  %v210 = vsel %vm121, %v208, 0
  %212 = vmatprep.subr.bf16.mxu0 0
  %213 = vmatpush1.bf16.msra.mxu0 0
  %214 = vmatprep.subr.bf16.mxu0 0
  %215 = vmatpush1.bf16.msra.mxu0 0
  %216 = vmatprep.subr.bf16.mxu0 0
  %217 = vmatpush1.bf16.msra.mxu0 0
  %218 = vmatprep.subr.bf16.mxu0 0
  %219 = vmatpush1.bf16.msra.mxu0 0
  %220 = vmatprep.subr.bf16.mxu0 %v102
  %221 = vmatpush1.bf16.msra.mxu0 %v101
  %222 = vmatprep.subr.bf16.mxu0 %v98
  %223 = vmatpush1.bf16.msra.mxu0 %v97
  %224 = vmatprep.subr.bf16.mxu0 %v94
  %225 = vmatpush1.bf16.msra.mxu0 %v93
  %226 = vmatprep.subr.bf16.mxu0 %v90
  %227 = vmatpush1.bf16.msra.mxu0 %v89
  %228 = vmatprep.subr.bf16.mxu0 0
  %229 = vmatpush2.bf16.msra.mxu0 0
  %230 = vmatprep.subr.bf16.mxu0 0
  %231 = vmatpush2.bf16.msra.mxu0 0
  %232 = vmatprep.subr.bf16.mxu0 0
  %233 = vmatpush2.bf16.msra.mxu0 0
  %234 = vmatprep.subr.bf16.mxu0 0
  %235 = vmatpush2.bf16.msra.mxu0 0
  %236 = vmatprep.subr.bf16.mxu0 0
  %237 = vmatpush2.bf16.msra.mxu0 0
  %238 = vmatprep.subr.bf16.mxu0 0
  %239 = vmatpush2.bf16.msra.mxu0 0
  %240 = vmatprep.subr.bf16.mxu0 0
  %241 = vmatpush2.bf16.msra.mxu0 0
  %242 = vmatprep.subr.bf16.mxu0 0
  %243 = vmatpush2.bf16.msra.mxu0 0
  %244 = vmatprep.mubr.bf16.mxu0 0
  %245 = vmatmul.mubr.bf16.gmra.mxu0 %v210
  %v246 = vpop.f32.mrf.mxu0
  %v247 = vadd.f32 0.0, %v246
  %v248 = vpop.f32.mrf.mxu0
  %v249 = vadd.f32 0.0, %v248
  %v250 = vpop.f32.mrf.mxu0
  %v251 = vpop.f32.mrf.mxu0
  %252 = vdwg.mxu0
  %253 = vmatprep.subr.bf16.mxu0 0
  %254 = vmatpush1.bf16.msra.mxu0 0
  %255 = vmatprep.subr.bf16.mxu0 0
  %256 = vmatpush1.bf16.msra.mxu0 0
  %257 = vmatprep.subr.bf16.mxu0 0
  %258 = vmatpush1.bf16.msra.mxu0 0
  %259 = vmatprep.subr.bf16.mxu0 0
  %260 = vmatpush1.bf16.msra.mxu0 0
  %261 = vmatprep.subr.bf16.mxu0 %v104
  %262 = vmatpush1.bf16.msra.mxu0 %v103
  %263 = vmatprep.subr.bf16.mxu0 %v100
  %264 = vmatpush1.bf16.msra.mxu0 %v99
  %265 = vmatprep.subr.bf16.mxu0 %v96
  %266 = vmatpush1.bf16.msra.mxu0 %v95
  %267 = vmatprep.subr.bf16.mxu0 %v92
  %268 = vmatpush1.bf16.msra.mxu0 %v91
  %269 = vmatprep.subr.bf16.mxu0 0
  %270 = vmatpush2.bf16.msra.mxu0 0
  %271 = vmatprep.subr.bf16.mxu0 0
  %272 = vmatpush2.bf16.msra.mxu0 0
  %273 = vmatprep.subr.bf16.mxu0 0
  %274 = vmatpush2.bf16.msra.mxu0 0
  %275 = vmatprep.subr.bf16.mxu0 0
  %276 = vmatpush2.bf16.msra.mxu0 0
  %277 = vmatprep.subr.bf16.mxu0 0
  %278 = vmatpush2.bf16.msra.mxu0 0
  %279 = vmatprep.subr.bf16.mxu0 0
  %280 = vmatpush2.bf16.msra.mxu0 0
  %281 = vmatprep.subr.bf16.mxu0 0
  %282 = vmatpush2.bf16.msra.mxu0 0
  %283 = vmatprep.subr.bf16.mxu0 0
  %284 = vmatpush2.bf16.msra.mxu0 0
  %285 = vmatprep.mubr.bf16.mxu0 0
  %286 = vmatmul.mubr.bf16.gmra.mxu0 %v210
  %v287 = vpop.f32.mrf.mxu0
  %v288 = vadd.f32 0.0, %v287
  %v289 = vpop.f32.mrf.mxu0
  %v290 = vadd.f32 0.0, %v289
  %v291 = vpop.f32.mrf.mxu0
  %v292 = vpop.f32.mrf.mxu0
  %293 = vdwg.mxu0
  %s294 = scalar_lea.vmem %s0, 8
  %v295 = vld [vmem:[%s294] sm:$0xf]
  %v297 = vsel %vm121, %v295, 0
  %299 = vmatprep.subr.bf16.mxu0 0
  %300 = vmatpush1.bf16.msra.mxu0 0
  %301 = vmatprep.subr.bf16.mxu0 0
  %302 = vmatpush1.bf16.msra.mxu0 0
  %303 = vmatprep.subr.bf16.mxu0 0
  %304 = vmatpush1.bf16.msra.mxu0 0
  %305 = vmatprep.subr.bf16.mxu0 0
  %306 = vmatpush1.bf16.msra.mxu0 0
  %307 = vmatprep.subr.bf16.mxu0 %v102
  %308 = vmatpush1.bf16.msra.mxu0 %v101
  %309 = vmatprep.subr.bf16.mxu0 %v98
  %310 = vmatpush1.bf16.msra.mxu0 %v97
  %311 = vmatprep.subr.bf16.mxu0 %v94
  %312 = vmatpush1.bf16.msra.mxu0 %v93
  %313 = vmatprep.subr.bf16.mxu0 %v90
  %314 = vmatpush1.bf16.msra.mxu0 %v89
  %315 = vmatprep.subr.bf16.mxu0 0
  %316 = vmatpush2.bf16.msra.mxu0 0
  %317 = vmatprep.subr.bf16.mxu0 0
  %318 = vmatpush2.bf16.msra.mxu0 0
  %319 = vmatprep.subr.bf16.mxu0 0
  %320 = vmatpush2.bf16.msra.mxu0 0
  %321 = vmatprep.subr.bf16.mxu0 0
  %322 = vmatpush2.bf16.msra.mxu0 0
  %323 = vmatprep.subr.bf16.mxu0 0
  %324 = vmatpush2.bf16.msra.mxu0 0
  %325 = vmatprep.subr.bf16.mxu0 0
  %326 = vmatpush2.bf16.msra.mxu0 0
  %327 = vmatprep.subr.bf16.mxu0 0
  %328 = vmatpush2.bf16.msra.mxu0 0
  %329 = vmatprep.subr.bf16.mxu0 0
  %330 = vmatpush2.bf16.msra.mxu0 0
  %331 = vmatprep.mubr.bf16.mxu0 0
  %332 = vmatmul.mubr.bf16.gmra.mxu0 %v297
  %v333 = vpop.f32.mrf.mxu0
  %v334 = vadd.f32 0.0, %v333
  %v335 = vpop.f32.mrf.mxu0
  %v336 = vadd.f32 0.0, %v335
  %v337 = vpop.f32.mrf.mxu0
  %v338 = vpop.f32.mrf.mxu0
  %339 = vdwg.mxu0
  %340 = vmatprep.subr.bf16.mxu0 0
  %341 = vmatpush1.bf16.msra.mxu0 0
  %342 = vmatprep.subr.bf16.mxu0 0
  %343 = vmatpush1.bf16.msra.mxu0 0
  %344 = vmatprep.subr.bf16.mxu0 0
  %345 = vmatpush1.bf16.msra.mxu0 0
  %346 = vmatprep.subr.bf16.mxu0 0
  %347 = vmatpush1.bf16.msra.mxu0 0
  %348 = vmatprep.subr.bf16.mxu0 %v104
  %349 = vmatpush1.bf16.msra.mxu0 %v103
  %350 = vmatprep.subr.bf16.mxu0 %v100
  %351 = vmatpush1.bf16.msra.mxu0 %v99
  %352 = vmatprep.subr.bf16.mxu0 %v96
  %353 = vmatpush1.bf16.msra.mxu0 %v95
  %354 = vmatprep.subr.bf16.mxu0 %v92
  %355 = vmatpush1.bf16.msra.mxu0 %v91
  %356 = vmatprep.subr.bf16.mxu0 0
  %357 = vmatpush2.bf16.msra.mxu0 0
  %358 = vmatprep.subr.bf16.mxu0 0
  %359 = vmatpush2.bf16.msra.mxu0 0
  %360 = vmatprep.subr.bf16.mxu0 0
  %361 = vmatpush2.bf16.msra.mxu0 0
  %362 = vmatprep.subr.bf16.mxu0 0
  %363 = vmatpush2.bf16.msra.mxu0 0
  %364 = vmatprep.subr.bf16.mxu0 0
  %365 = vmatpush2.bf16.msra.mxu0 0
  %366 = vmatprep.subr.bf16.mxu0 0
  %367 = vmatpush2.bf16.msra.mxu0 0
  %368 = vmatprep.subr.bf16.mxu0 0
  %369 = vmatpush2.bf16.msra.mxu0 0
  %370 = vmatprep.subr.bf16.mxu0 0
  %371 = vmatpush2.bf16.msra.mxu0 0
  %372 = vmatprep.mubr.bf16.mxu0 0
  %373 = vmatmul.mubr.bf16.gmra.mxu0 %v297
  %v374 = vpop.f32.mrf.mxu0
  %v375 = vadd.f32 0.0, %v374
  %v376 = vpop.f32.mrf.mxu0
  %v377 = vadd.f32 0.0, %v376
  %v378 = vpop.f32.mrf.mxu0
  %v379 = vpop.f32.mrf.mxu0
  %380 = vdwg.mxu0
  %s381 = scalar_lea.vmem %s0, 12
  %v382 = vld [vmem:[%s381] sm:$0xf]
  %v384 = vsel %vm121, %v382, 0
  %386 = vmatprep.subr.bf16.mxu0 0
  %387 = vmatpush1.bf16.msra.mxu0 0
  %388 = vmatprep.subr.bf16.mxu0 0
  %389 = vmatpush1.bf16.msra.mxu0 0
  %390 = vmatprep.subr.bf16.mxu0 0
  %391 = vmatpush1.bf16.msra.mxu0 0
  %392 = vmatprep.subr.bf16.mxu0 0
  %393 = vmatpush1.bf16.msra.mxu0 0
  %394 = vmatprep.subr.bf16.mxu0 %v102
  %395 = vmatpush1.bf16.msra.mxu0 %v101
  %396 = vmatprep.subr.bf16.mxu0 %v98
  %397 = vmatpush1.bf16.msra.mxu0 %v97
  %398 = vmatprep.subr.bf16.mxu0 %v94
  %399 = vmatpush1.bf16.msra.mxu0 %v93
  %400 = vmatprep.subr.bf16.mxu0 %v90
  %401 = vmatpush1.bf16.msra.mxu0 %v89
  %402 = vmatprep.subr.bf16.mxu0 0
  %403 = vmatpush2.bf16.msra.mxu0 0
  %404 = vmatprep.subr.bf16.mxu0 0
  %405 = vmatpush2.bf16.msra.mxu0 0
  %406 = vmatprep.subr.bf16.mxu0 0
  %407 = vmatpush2.bf16.msra.mxu0 0
  %408 = vmatprep.subr.bf16.mxu0 0
  %409 = vmatpush2.bf16.msra.mxu0 0
  %410 = vmatprep.subr.bf16.mxu0 0
  %411 = vmatpush2.bf16.msra.mxu0 0
  %412 = vmatprep.subr.bf16.mxu0 0
  %413 = vmatpush2.bf16.msra.mxu0 0
  %414 = vmatprep.subr.bf16.mxu0 0
  %415 = vmatpush2.bf16.msra.mxu0 0
  %416 = vmatprep.subr.bf16.mxu0 0
  %417 = vmatpush2.bf16.msra.mxu0 0
  %418 = vmatprep.mubr.bf16.mxu0 0
  %419 = vmatmul.mubr.bf16.gmra.mxu0 %v384
  %v420 = vpop.f32.mrf.mxu0
  %v421 = vadd.f32 0.0, %v420
  %v422 = vpop.f32.mrf.mxu0
  %v423 = vadd.f32 0.0, %v422
  %v424 = vpop.f32.mrf.mxu0
  %v425 = vpop.f32.mrf.mxu0
  %426 = vdwg.mxu0
  %427 = vmatprep.subr.bf16.mxu0 0
  %428 = vmatpush1.bf16.msra.mxu0 0
  %429 = vmatprep.subr.bf16.mxu0 0
  %430 = vmatpush1.bf16.msra.mxu0 0
  %431 = vmatprep.subr.bf16.mxu0 0
  %432 = vmatpush1.bf16.msra.mxu0 0
  %433 = vmatprep.subr.bf16.mxu0 0
  %434 = vmatpush1.bf16.msra.mxu0 0
  %435 = vmatprep.subr.bf16.mxu0 %v104
  %436 = vmatpush1.bf16.msra.mxu0 %v103
  %437 = vmatprep.subr.bf16.mxu0 %v100
  %438 = vmatpush1.bf16.msra.mxu0 %v99
  %439 = vmatprep.subr.bf16.mxu0 %v96
  %440 = vmatpush1.bf16.msra.mxu0 %v95
  %441 = vmatprep.subr.bf16.mxu0 %v92
  %442 = vmatpush1.bf16.msra.mxu0 %v91
  %443 = vmatprep.subr.bf16.mxu0 0
  %444 = vmatpush2.bf16.msra.mxu0 0
  %445 = vmatprep.subr.bf16.mxu0 0
  %446 = vmatpush2.bf16.msra.mxu0 0
  %447 = vmatprep.subr.bf16.mxu0 0
  %448 = vmatpush2.bf16.msra.mxu0 0
  %449 = vmatprep.subr.bf16.mxu0 0
  %450 = vmatpush2.bf16.msra.mxu0 0
  %451 = vmatprep.subr.bf16.mxu0 0
  %452 = vmatpush2.bf16.msra.mxu0 0
  %453 = vmatprep.subr.bf16.mxu0 0
  %454 = vmatpush2.bf16.msra.mxu0 0
  %455 = vmatprep.subr.bf16.mxu0 0
  %456 = vmatpush2.bf16.msra.mxu0 0
  %457 = vmatprep.subr.bf16.mxu0 0
  %458 = vmatpush2.bf16.msra.mxu0 0
  %459 = vmatprep.mubr.bf16.mxu0 0
  %460 = vmatmul.mubr.bf16.gmra.mxu0 %v384
  %v461 = vpop.f32.mrf.mxu0
  %v462 = vadd.f32 0.0, %v461
  %v463 = vpop.f32.mrf.mxu0
  %v464 = vadd.f32 0.0, %v463
  %v465 = vpop.f32.mrf.mxu0
  %v466 = vpop.f32.mrf.mxu0
  %467 = vdwg.mxu0
  %v468 = vadd.f32 %v160, %v249
  %v469 = vadd.f32 %v468, %v375
  %v470 = vadd.f32 %v469, %v464
  %v471 = vmax.f32 %v470, 0.0
  %v472 = vadd.f32 %v247, %v336
  %v473 = vadd.f32 %v472, %v462
  %v474 = vadd.f32 %v473, %v203
  %v475 = vmax.f32 %v474, 0.0
  %v476 = vadd.f32 %v334, %v423
  %v477 = vadd.f32 %v476, %v201
  %v478 = vadd.f32 %v477, %v290
  %v479 = vmax.f32 %v478, 0.0
  %v480 = vadd.f32 %v421, %v162
  %v481 = vadd.f32 %v480, %v288
  %v482 = vadd.f32 %v481, %v377
  %v483 = vmax.f32 %v482, 0.0
  %v484 = vpack.c.bf16 %v475, %v471
  %v485 = vpack.c.bf16 %v483, %v479
  %v486 = vld [vmem:[%s2] sm:$0xff]
  %v487 = vld [vmem:[%s2 + $0x8] sm:$0xff]
  %v488 = vld [vmem:[%s2 + $0x10] sm:$0xff]
  %v489 = vld [vmem:[%s2 + $0x18] sm:$0xff]
  %v490 = vld [vmem:[%s2 + $0x20] sm:$0xff]
  %v491 = vld [vmem:[%s2 + $0x28] sm:$0xff]
  %v492 = vld [vmem:[%s2 + $0x30] sm:$0xff]
  %v493 = vld [vmem:[%s2 + $0x38] sm:$0xff]
  %v494 = vld [vmem:[%s2 + $0x40] sm:$0xff]
  %v495 = vld [vmem:[%s2 + $0x48] sm:$0xff]
  %v496 = vld [vmem:[%s2 + $0x50] sm:$0xff]
  %v497 = vld [vmem:[%s2 + $0x58] sm:$0xff]
  %v498 = vld [vmem:[%s2 + $0x60] sm:$0xff]
  %v499 = vld [vmem:[%s2 + $0x68] sm:$0xff]
  %v500 = vld [vmem:[%s2 + $0x70] sm:$0xff]
  %v501 = vld [vmem:[%s2 + $0x78] sm:$0xff]
  %v502 = vld [vmem:[%s2 + $0x80] sm:$0xff]
  %v503 = vld [vmem:[%s2 + $0x88] sm:$0xff]
  %v504 = vld [vmem:[%s2 + $0x90] sm:$0xff]
  %v505 = vld [vmem:[%s2 + $0x98] sm:$0xff]
  %v506 = vld [vmem:[%s2 + $0xa0] sm:$0xff]
  %v507 = vld [vmem:[%s2 + $0xa8] sm:$0xff]
  %v508 = vld [vmem:[%s2 + $0xb0] sm:$0xff]
  %v509 = vld [vmem:[%s2 + $0xb8] sm:$0xff]
  %v510 = vld [vmem:[%s2 + $0xc0] sm:$0xff]
  %v511 = vld [vmem:[%s2 + $0xc8] sm:$0xff]
  %v512 = vld [vmem:[%s2 + $0xd0] sm:$0xff]
  %v513 = vld [vmem:[%s2 + $0xd8] sm:$0xff]
  %v514 = vld [vmem:[%s2 + $0xe0] sm:$0xff]
  %v515 = vld [vmem:[%s2 + $0xe8] sm:$0xff]
  %v516 = vld [vmem:[%s2 + $0xf0] sm:$0xff]
  %v517 = vld [vmem:[%s2 + $0xf8] sm:$0xff]
  %v550 = vunpack.c.l.b16 %v486
  %v551 = vunpack.c.h.b16 %v486
  %v552 = vunpack.c.l.b16 %v487
  %v553 = vunpack.c.h.b16 %v487
  %v554 = vunpack.c.l.b16 %v488
  %v555 = vunpack.c.h.b16 %v488
  %v556 = vunpack.c.l.b16 %v489
  %v557 = vunpack.c.h.b16 %v489
  %v558 = vunpack.c.l.b16 %v490
  %v559 = vunpack.c.h.b16 %v490
  %v560 = vunpack.c.l.b16 %v491
  %v561 = vunpack.c.h.b16 %v491
  %v562 = vunpack.c.l.b16 %v492
  %v563 = vunpack.c.h.b16 %v492
  %v564 = vunpack.c.l.b16 %v493
  %v565 = vunpack.c.h.b16 %v493
  %v566 = vunpack.c.l.b16 %v494
  %v567 = vunpack.c.h.b16 %v494
  %v568 = vunpack.c.l.b16 %v495
  %v569 = vunpack.c.h.b16 %v495
  %v570 = vunpack.c.l.b16 %v496
  %v571 = vunpack.c.h.b16 %v496
  %v572 = vunpack.c.l.b16 %v497
  %v573 = vunpack.c.h.b16 %v497
  %v574 = vunpack.c.l.b16 %v498
  %v575 = vunpack.c.h.b16 %v498
  %v576 = vunpack.c.l.b16 %v499
  %v577 = vunpack.c.h.b16 %v499
  %v578 = vunpack.c.l.b16 %v500
  %v579 = vunpack.c.h.b16 %v500
  %v580 = vunpack.c.l.b16 %v501
  %v581 = vunpack.c.h.b16 %v501
  %v582 = vunpack.c.l.b16 %v502
  %v583 = vunpack.c.h.b16 %v502
  %v584 = vunpack.c.l.b16 %v503
  %v585 = vunpack.c.h.b16 %v503
  %v586 = vunpack.c.l.b16 %v504
  %v587 = vunpack.c.h.b16 %v504
  %v588 = vunpack.c.l.b16 %v505
  %v589 = vunpack.c.h.b16 %v505
  %v590 = vunpack.c.l.b16 %v506
  %v591 = vunpack.c.h.b16 %v506
  %v592 = vunpack.c.l.b16 %v507
  %v593 = vunpack.c.h.b16 %v507
  %v594 = vunpack.c.l.b16 %v508
  %v595 = vunpack.c.h.b16 %v508
  %v596 = vunpack.c.l.b16 %v509
  %v597 = vunpack.c.h.b16 %v509
  %v598 = vunpack.c.l.b16 %v510
  %v599 = vunpack.c.h.b16 %v510
  %v600 = vunpack.c.l.b16 %v511
  %v601 = vunpack.c.h.b16 %v511
  %v602 = vunpack.c.l.b16 %v512
  %v603 = vunpack.c.h.b16 %v512
  %v604 = vunpack.c.l.b16 %v513
  %v605 = vunpack.c.h.b16 %v513
  %v606 = vunpack.c.l.b16 %v514
  %v607 = vunpack.c.h.b16 %v514
  %v608 = vunpack.c.l.b16 %v515
  %v609 = vunpack.c.h.b16 %v515
  %v610 = vunpack.c.l.b16 %v516
  %v611 = vunpack.c.h.b16 %v516
  %v612 = vunpack.c.l.b16 %v517
  %v613 = vunpack.c.h.b16 %v517
  %v614 = vpack.c.b16 %v554, %v550
  %v615 = vpack.c.b16 %v555, %v551
  %v616 = vpack.c.b16 %v556, %v552
  %v617 = vpack.c.b16 %v557, %v553
  %v618 = vpack.c.b16 %v562, %v558
  %v619 = vpack.c.b16 %v563, %v559
  %v620 = vpack.c.b16 %v564, %v560
  %v621 = vpack.c.b16 %v565, %v561
  %v622 = vpack.c.b16 %v570, %v566
  %v623 = vpack.c.b16 %v571, %v567
  %v624 = vpack.c.b16 %v572, %v568
  %v625 = vpack.c.b16 %v573, %v569
  %v626 = vpack.c.b16 %v578, %v574
  %v627 = vpack.c.b16 %v579, %v575
  %v628 = vpack.c.b16 %v580, %v576
  %v629 = vpack.c.b16 %v581, %v577
  %v630 = vpack.c.b16 %v586, %v582
  %v631 = vpack.c.b16 %v587, %v583
  %v632 = vpack.c.b16 %v588, %v584
  %v633 = vpack.c.b16 %v589, %v585
  %v634 = vpack.c.b16 %v594, %v590
  %v635 = vpack.c.b16 %v595, %v591
  %v636 = vpack.c.b16 %v596, %v592
  %v637 = vpack.c.b16 %v597, %v593
  %v638 = vpack.c.b16 %v602, %v598
  %v639 = vpack.c.b16 %v603, %v599
  %v640 = vpack.c.b16 %v604, %v600
  %v641 = vpack.c.b16 %v605, %v601
  %v642 = vpack.c.b16 %v610, %v606
  %v643 = vpack.c.b16 %v611, %v607
  %v644 = vpack.c.b16 %v612, %v608
  %v645 = vpack.c.b16 %v613, %v609
  %678 = vmatprep.subr.bf16.mxu0 %v643
  %679 = vmatpush1.bf16.msra.mxu0 %v642
  %680 = vmatprep.subr.bf16.mxu0 %v639
  %681 = vmatpush1.bf16.msra.mxu0 %v638
  %682 = vmatprep.subr.bf16.mxu0 %v635
  %683 = vmatpush1.bf16.msra.mxu0 %v634
  %684 = vmatprep.subr.bf16.mxu0 %v631
  %685 = vmatpush1.bf16.msra.mxu0 %v630
  %686 = vmatprep.subr.bf16.mxu0 %v627
  %687 = vmatpush1.bf16.msra.mxu0 %v626
  %688 = vmatprep.subr.bf16.mxu0 %v623
  %689 = vmatpush1.bf16.msra.mxu0 %v622
  %690 = vmatprep.subr.bf16.mxu0 %v619
  %691 = vmatpush1.bf16.msra.mxu0 %v618
  %692 = vmatprep.subr.bf16.mxu0 %v615
  %693 = vmatpush1.bf16.msra.mxu0 %v614
  %694 = vmatprep.subr.bf16.mxu0 0
  %695 = vmatpush2.bf16.msra.mxu0 0
  %696 = vmatprep.subr.bf16.mxu0 0
  %697 = vmatpush2.bf16.msra.mxu0 0
  %698 = vmatprep.subr.bf16.mxu0 0
  %699 = vmatpush2.bf16.msra.mxu0 0
  %700 = vmatprep.subr.bf16.mxu0 0
  %701 = vmatpush2.bf16.msra.mxu0 0
  %702 = vmatprep.subr.bf16.mxu0 0
  %703 = vmatpush2.bf16.msra.mxu0 0
  %704 = vmatprep.subr.bf16.mxu0 0
  %705 = vmatpush2.bf16.msra.mxu0 0
  %706 = vmatprep.subr.bf16.mxu0 0
  %707 = vmatpush2.bf16.msra.mxu0 0
  %708 = vmatprep.subr.bf16.mxu0 0
  %709 = vmatpush2.bf16.msra.mxu0 0
  %710 = vmatprep.mubr.bf16.mxu0 0
  %711 = vmatmul.mubr.bf16.gmra.mxu0 %v484
  %v712 = vpop.f32.mrf.mxu0
  %v713 = vadd.f32 0.0, %v712
  %v714 = vpop.f32.mrf.mxu0
  %v715 = vadd.f32 0.0, %v714
  %v716 = vpop.f32.mrf.mxu0
  %v717 = vadd.f32 0.0, %v716
  %v718 = vpop.f32.mrf.mxu0
  %v719 = vadd.f32 0.0, %v718
  %720 = vmatprep.mubr.bf16.mxu0 0
  %721 = vmatmul.mubr.bf16.gmra.mxu0 %v485
  %v722 = vpop.f32.mrf.mxu0
  %v723 = vadd.f32 0.0, %v722
  %v724 = vpop.f32.mrf.mxu0
  %v725 = vadd.f32 0.0, %v724
  %v726 = vpop.f32.mrf.mxu0
  %v727 = vadd.f32 0.0, %v726
  %v728 = vpop.f32.mrf.mxu0
  %v729 = vadd.f32 0.0, %v728
  %730 = vdwg.mxu0
  %731 = vmatprep.subr.bf16.mxu0 %v645
  %732 = vmatpush1.bf16.msra.mxu0 %v644
  %733 = vmatprep.subr.bf16.mxu0 %v641
  %734 = vmatpush1.bf16.msra.mxu0 %v640
  %735 = vmatprep.subr.bf16.mxu0 %v637
  %736 = vmatpush1.bf16.msra.mxu0 %v636
  %737 = vmatprep.subr.bf16.mxu0 %v633
  %738 = vmatpush1.bf16.msra.mxu0 %v632
  %739 = vmatprep.subr.bf16.mxu0 %v629
  %740 = vmatpush1.bf16.msra.mxu0 %v628
  %741 = vmatprep.subr.bf16.mxu0 %v625
  %742 = vmatpush1.bf16.msra.mxu0 %v624
  %743 = vmatprep.subr.bf16.mxu0 %v621
  %744 = vmatpush1.bf16.msra.mxu0 %v620
  %745 = vmatprep.subr.bf16.mxu0 %v617
  %746 = vmatpush1.bf16.msra.mxu0 %v616
  %747 = vmatprep.subr.bf16.mxu0 0
  %748 = vmatpush2.bf16.msra.mxu0 0
  %749 = vmatprep.subr.bf16.mxu0 0
  %750 = vmatpush2.bf16.msra.mxu0 0
  %751 = vmatprep.subr.bf16.mxu0 0
  %752 = vmatpush2.bf16.msra.mxu0 0
  %753 = vmatprep.subr.bf16.mxu0 0
  %754 = vmatpush2.bf16.msra.mxu0 0
  %755 = vmatprep.subr.bf16.mxu0 0
  %756 = vmatpush2.bf16.msra.mxu0 0
  %757 = vmatprep.subr.bf16.mxu0 0
  %758 = vmatpush2.bf16.msra.mxu0 0
  %759 = vmatprep.subr.bf16.mxu0 0
  %760 = vmatpush2.bf16.msra.mxu0 0
  %761 = vmatprep.subr.bf16.mxu0 0
  %762 = vmatpush2.bf16.msra.mxu0 0
  %763 = vmatprep.mubr.bf16.mxu0 0
  %764 = vmatmul.mubr.bf16.gmra.mxu0 %v484
  %v765 = vpop.f32.mrf.mxu0
  %v766 = vadd.f32 0.0, %v765
  %v767 = vpop.f32.mrf.mxu0
  %v768 = vadd.f32 0.0, %v767
  %v769 = vpop.f32.mrf.mxu0
  %v770 = vadd.f32 0.0, %v769
  %v771 = vpop.f32.mrf.mxu0
  %v772 = vadd.f32 0.0, %v771
  %773 = vmatprep.mubr.bf16.mxu0 0
  %774 = vmatmul.mubr.bf16.gmra.mxu0 %v485
  %v775 = vpop.f32.mrf.mxu0
  %v776 = vadd.f32 0.0, %v775
  %v777 = vpop.f32.mrf.mxu0
  %v778 = vadd.f32 0.0, %v777
  %v779 = vpop.f32.mrf.mxu0
  %v780 = vadd.f32 0.0, %v779
  %v781 = vpop.f32.mrf.mxu0
  %v782 = vadd.f32 0.0, %v781
  %783 = vdwg.mxu0
  %v784 = vld [vmem:[%s4] sm:$0x1]
  %v786 = vlaneseq
  %v787 = vshrl.u32 %v786, 7
  %v788 = vsub.s32 0, %v787
  %v789 = vrot.slane %v784, %v788
  %v791 = vld [vmem:[%s5] sm:$0x1]
  %v793 = vlaneseq
  %v794 = vshrl.u32 %v793, 7
  %v795 = vsub.s32 0, %v794
  %v796 = vrot.slane %v791, %v795
  %v798 = vadd.f32 %v713, %v719
  %v799 = vadd.f32 %v798, %v776
  %v800 = vadd.f32 %v799, %v782
  %801 = vadd.xlane.f32.xlu0 %v800
  %v802 = vpop.xlane.xlu0 %801
  %v803 = vrcp.pop 128.0
  %v804 = vmul.f32 %v802, %v803
  %v805 = vmul.f32 %v800, %v800
  %806 = vadd.xlane.f32.xlu0 %v805
  %v807 = vpop.xlane.xlu0 %806
  %v808 = vmul.f32 %v807, %v803
  %v809 = vmul.f32 %v804, %v804
  %v810 = vsub.f32 %v808, %v809
  %v811 = vmax.f32 %v810, 0.0
  %v812 = vsub.f32 %v800, %v804
  %v813 = vadd.f32 %v811, 1e-05
  %v814 = vrsqrt.pop %v813
  %v815 = vmul.f32 %v812, %v814
  %v816 = vmul.f32 %v815, %v789
  %v817 = vadd.f32 %v816, %v796
  %v818 = vmax.f32 %v817, 0.0
  %v819 = vpack.c.bf16 %v818, %v818
  %v820 = vld [vmem:[%s3] sm:$0xf]
  %v821 = vld [vmem:[%s3 + $0x4] sm:$0xf]
  %v822 = vld [vmem:[%s3 + $0x8] sm:$0xf]
  %v823 = vld [vmem:[%s3 + $0xc] sm:$0xf]
  %v824 = vld [vmem:[%s3 + $0x10] sm:$0xf]
  %v825 = vld [vmem:[%s3 + $0x14] sm:$0xf]
  %v826 = vld [vmem:[%s3 + $0x18] sm:$0xf]
  %v827 = vld [vmem:[%s3 + $0x1c] sm:$0xf]
  %v828 = vld [vmem:[%s3 + $0x20] sm:$0xf]
  %v829 = vld [vmem:[%s3 + $0x24] sm:$0xf]
  %v830 = vld [vmem:[%s3 + $0x28] sm:$0xf]
  %v831 = vld [vmem:[%s3 + $0x2c] sm:$0xf]
  %v832 = vld [vmem:[%s3 + $0x30] sm:$0xf]
  %v833 = vld [vmem:[%s3 + $0x34] sm:$0xf]
  %v834 = vld [vmem:[%s3 + $0x38] sm:$0xf]
  %v835 = vld [vmem:[%s3 + $0x3c] sm:$0xf]
  %v836 = vadd.f32 %v717, %v725
  %v837 = vadd.f32 %v836, %v780
  %v838 = vadd.f32 %v837, %v768
  %839 = vadd.xlane.f32.xlu0 %v838
  %v840 = vpop.xlane.xlu0 %839
  %v841 = vmul.f32 %v840, %v803
  %v842 = vmul.f32 %v838, %v838
  %843 = vadd.xlane.f32.xlu0 %v842
  %v844 = vpop.xlane.xlu0 %843
  %v845 = vmul.f32 %v844, %v803
  %v846 = vmul.f32 %v841, %v841
  %v847 = vsub.f32 %v845, %v846
  %v848 = vmax.f32 %v847, 0.0
  %v849 = vsub.f32 %v838, %v841
  %v850 = vadd.f32 %v848, 1e-05
  %v851 = vrsqrt.pop %v850
  %v852 = vmul.f32 %v849, %v851
  %v853 = vmul.f32 %v852, %v789
  %v854 = vadd.f32 %v853, %v796
  %v855 = vmax.f32 %v854, 0.0
  %v856 = vpack.c.bf16 %v855, %v855
  %s857 = scalar_lea.vmem %s3, 64
  %v858 = vld [vmem:[%s857] sm:$0xf]
  %v859 = vld [vmem:[%s857 + $0x4] sm:$0xf]
  %v860 = vld [vmem:[%s857 + $0x8] sm:$0xf]
  %v861 = vld [vmem:[%s857 + $0xc] sm:$0xf]
  %v862 = vld [vmem:[%s857 + $0x10] sm:$0xf]
  %v863 = vld [vmem:[%s857 + $0x14] sm:$0xf]
  %v864 = vld [vmem:[%s857 + $0x18] sm:$0xf]
  %v865 = vld [vmem:[%s857 + $0x1c] sm:$0xf]
  %v866 = vld [vmem:[%s857 + $0x20] sm:$0xf]
  %v867 = vld [vmem:[%s857 + $0x24] sm:$0xf]
  %v868 = vld [vmem:[%s857 + $0x28] sm:$0xf]
  %v869 = vld [vmem:[%s857 + $0x2c] sm:$0xf]
  %v870 = vld [vmem:[%s857 + $0x30] sm:$0xf]
  %v871 = vld [vmem:[%s857 + $0x34] sm:$0xf]
  %v872 = vld [vmem:[%s857 + $0x38] sm:$0xf]
  %v873 = vld [vmem:[%s857 + $0x3c] sm:$0xf]
  %v890 = vunpack.c.l.b16 %v858
  %v891 = vunpack.c.l.b16 %v859
  %v892 = vunpack.c.l.b16 %v860
  %v893 = vunpack.c.l.b16 %v861
  %v894 = vunpack.c.l.b16 %v862
  %v895 = vunpack.c.l.b16 %v863
  %v896 = vunpack.c.l.b16 %v864
  %v897 = vunpack.c.l.b16 %v865
  %v898 = vunpack.c.l.b16 %v866
  %v899 = vunpack.c.l.b16 %v867
  %v900 = vunpack.c.l.b16 %v868
  %v901 = vunpack.c.l.b16 %v869
  %v902 = vunpack.c.l.b16 %v870
  %v903 = vunpack.c.l.b16 %v871
  %v904 = vunpack.c.l.b16 %v872
  %v905 = vunpack.c.l.b16 %v873
  %v906 = vpack.c.b16 %v891, %v890
  %v907 = vpack.c.b16 %v893, %v892
  %v908 = vpack.c.b16 %v895, %v894
  %v909 = vpack.c.b16 %v897, %v896
  %v910 = vpack.c.b16 %v899, %v898
  %v911 = vpack.c.b16 %v901, %v900
  %v912 = vpack.c.b16 %v903, %v902
  %v913 = vpack.c.b16 %v905, %v904
  %922 = vmatprep.subr.bf16.mxu0 0
  %923 = vmatpush1.bf16.msra.mxu0 %v913
  %924 = vmatprep.subr.bf16.mxu0 0
  %925 = vmatpush1.bf16.msra.mxu0 %v912
  %926 = vmatprep.subr.bf16.mxu0 0
  %927 = vmatpush1.bf16.msra.mxu0 %v911
  %928 = vmatprep.subr.bf16.mxu0 0
  %929 = vmatpush1.bf16.msra.mxu0 %v910
  %930 = vmatprep.subr.bf16.mxu0 0
  %931 = vmatpush1.bf16.msra.mxu0 %v909
  %932 = vmatprep.subr.bf16.mxu0 0
  %933 = vmatpush1.bf16.msra.mxu0 %v908
  %934 = vmatprep.subr.bf16.mxu0 0
  %935 = vmatpush1.bf16.msra.mxu0 %v907
  %936 = vmatprep.subr.bf16.mxu0 0
  %937 = vmatpush1.bf16.msra.mxu0 %v906
  %938 = vmatprep.subr.bf16.mxu0 0
  %939 = vmatpush2.bf16.msra.mxu0 0
  %940 = vmatprep.subr.bf16.mxu0 0
  %941 = vmatpush2.bf16.msra.mxu0 0
  %942 = vmatprep.subr.bf16.mxu0 0
  %943 = vmatpush2.bf16.msra.mxu0 0
  %944 = vmatprep.subr.bf16.mxu0 0
  %945 = vmatpush2.bf16.msra.mxu0 0
  %946 = vmatprep.subr.bf16.mxu0 0
  %947 = vmatpush2.bf16.msra.mxu0 0
  %948 = vmatprep.subr.bf16.mxu0 0
  %949 = vmatpush2.bf16.msra.mxu0 0
  %950 = vmatprep.subr.bf16.mxu0 0
  %951 = vmatpush2.bf16.msra.mxu0 0
  %952 = vmatprep.subr.bf16.mxu0 0
  %953 = vmatpush2.bf16.msra.mxu0 0
  %954 = vmatprep.mubr.bf16.mxu0 0
  %955 = vmatmul.mubr.bf16.gmra.mxu0 %v856
  %v956 = vpop.f32.mrf.mxu0
  %v957 = vadd.f32 0.0, %v956
  %v958 = vpop.f32.mrf.mxu0
  %v959 = vpop.f32.mrf.mxu0
  %v960 = vpop.f32.mrf.mxu0
  %961 = vdwg.mxu0
  %v978 = vunpack.c.l.b16 %v820
  %v979 = vunpack.c.l.b16 %v821
  %v980 = vunpack.c.l.b16 %v822
  %v981 = vunpack.c.l.b16 %v823
  %v982 = vunpack.c.l.b16 %v824
  %v983 = vunpack.c.l.b16 %v825
  %v984 = vunpack.c.l.b16 %v826
  %v985 = vunpack.c.l.b16 %v827
  %v986 = vunpack.c.l.b16 %v828
  %v987 = vunpack.c.l.b16 %v829
  %v988 = vunpack.c.l.b16 %v830
  %v989 = vunpack.c.l.b16 %v831
  %v990 = vunpack.c.l.b16 %v832
  %v991 = vunpack.c.l.b16 %v833
  %v992 = vunpack.c.l.b16 %v834
  %v993 = vunpack.c.l.b16 %v835
  %v994 = vpack.c.b16 %v979, %v978
  %v995 = vpack.c.b16 %v981, %v980
  %v996 = vpack.c.b16 %v983, %v982
  %v997 = vpack.c.b16 %v985, %v984
  %v998 = vpack.c.b16 %v987, %v986
  %v999 = vpack.c.b16 %v989, %v988
  %v1000 = vpack.c.b16 %v991, %v990
  %v1001 = vpack.c.b16 %v993, %v992
  %1010 = vmatprep.subr.bf16.mxu0 0
  %1011 = vmatpush1.bf16.msra.mxu0 %v1001
  %1012 = vmatprep.subr.bf16.mxu0 0
  %1013 = vmatpush1.bf16.msra.mxu0 %v1000
  %1014 = vmatprep.subr.bf16.mxu0 0
  %1015 = vmatpush1.bf16.msra.mxu0 %v999
  %1016 = vmatprep.subr.bf16.mxu0 0
  %1017 = vmatpush1.bf16.msra.mxu0 %v998
  %1018 = vmatprep.subr.bf16.mxu0 0
  %1019 = vmatpush1.bf16.msra.mxu0 %v997
  %1020 = vmatprep.subr.bf16.mxu0 0
  %1021 = vmatpush1.bf16.msra.mxu0 %v996
  %1022 = vmatprep.subr.bf16.mxu0 0
  %1023 = vmatpush1.bf16.msra.mxu0 %v995
  %1024 = vmatprep.subr.bf16.mxu0 0
  %1025 = vmatpush1.bf16.msra.mxu0 %v994
  %1026 = vmatprep.subr.bf16.mxu0 0
  %1027 = vmatpush2.bf16.msra.mxu0 0
  %1028 = vmatprep.subr.bf16.mxu0 0
  %1029 = vmatpush2.bf16.msra.mxu0 0
  %1030 = vmatprep.subr.bf16.mxu0 0
  %1031 = vmatpush2.bf16.msra.mxu0 0
  %1032 = vmatprep.subr.bf16.mxu0 0
  %1033 = vmatpush2.bf16.msra.mxu0 0
  %1034 = vmatprep.subr.bf16.mxu0 0
  %1035 = vmatpush2.bf16.msra.mxu0 0
  %1036 = vmatprep.subr.bf16.mxu0 0
  %1037 = vmatpush2.bf16.msra.mxu0 0
  %1038 = vmatprep.subr.bf16.mxu0 0
  %1039 = vmatpush2.bf16.msra.mxu0 0
  %1040 = vmatprep.subr.bf16.mxu0 0
  %1041 = vmatpush2.bf16.msra.mxu0 0
  %1042 = vmatprep.mubr.bf16.mxu0 0
  %1043 = vmatmul.mubr.bf16.gmra.mxu0 %v819
  %v1044 = vpop.f32.mrf.mxu0
  %v1045 = vadd.f32 %v957, %v1044
  %v1046 = vpop.f32.mrf.mxu0
  %v1047 = vpop.f32.mrf.mxu0
  %v1048 = vpop.f32.mrf.mxu0
  %1049 = vdwg.mxu0
  %v1050 = vadd.f32 %v723, %v729
  %v1051 = vadd.f32 %v1050, %v766
  %v1052 = vadd.f32 %v1051, %v772
  %1053 = vadd.xlane.f32.xlu0 %v1052
  %v1054 = vpop.xlane.xlu0 %1053
  %v1055 = vmul.f32 %v1054, %v803
  %v1056 = vmul.f32 %v1052, %v1052
  %1057 = vadd.xlane.f32.xlu0 %v1056
  %v1058 = vpop.xlane.xlu0 %1057
  %v1059 = vmul.f32 %v1058, %v803
  %v1060 = vmul.f32 %v1055, %v1055
  %v1061 = vsub.f32 %v1059, %v1060
  %v1062 = vmax.f32 %v1061, 0.0
  %v1063 = vsub.f32 %v1052, %v1055
  %v1064 = vadd.f32 %v1062, 1e-05
  %v1065 = vrsqrt.pop %v1064
  %v1066 = vmul.f32 %v1063, %v1065
  %v1067 = vmul.f32 %v1066, %v789
  %v1068 = vadd.f32 %v1067, %v796
  %v1069 = vmax.f32 %v1068, 0.0
  %v1070 = vpack.c.bf16 %v1069, %v1069
  %s1071 = scalar_lea.vmem %s3, 128
  %v1072 = vld [vmem:[%s1071] sm:$0xf]
  %v1073 = vld [vmem:[%s1071 + $0x4] sm:$0xf]
  %v1074 = vld [vmem:[%s1071 + $0x8] sm:$0xf]
  %v1075 = vld [vmem:[%s1071 + $0xc] sm:$0xf]
  %v1076 = vld [vmem:[%s1071 + $0x10] sm:$0xf]
  %v1077 = vld [vmem:[%s1071 + $0x14] sm:$0xf]
  %v1078 = vld [vmem:[%s1071 + $0x18] sm:$0xf]
  %v1079 = vld [vmem:[%s1071 + $0x1c] sm:$0xf]
  %v1080 = vld [vmem:[%s1071 + $0x20] sm:$0xf]
  %v1081 = vld [vmem:[%s1071 + $0x24] sm:$0xf]
  %v1082 = vld [vmem:[%s1071 + $0x28] sm:$0xf]
  %v1083 = vld [vmem:[%s1071 + $0x2c] sm:$0xf]
  %v1084 = vld [vmem:[%s1071 + $0x30] sm:$0xf]
  %v1085 = vld [vmem:[%s1071 + $0x34] sm:$0xf]
  %v1086 = vld [vmem:[%s1071 + $0x38] sm:$0xf]
  %v1087 = vld [vmem:[%s1071 + $0x3c] sm:$0xf]
  %v1104 = vunpack.c.l.b16 %v1072
  %v1105 = vunpack.c.l.b16 %v1073
  %v1106 = vunpack.c.l.b16 %v1074
  %v1107 = vunpack.c.l.b16 %v1075
  %v1108 = vunpack.c.l.b16 %v1076
  %v1109 = vunpack.c.l.b16 %v1077
  %v1110 = vunpack.c.l.b16 %v1078
  %v1111 = vunpack.c.l.b16 %v1079
  %v1112 = vunpack.c.l.b16 %v1080
  %v1113 = vunpack.c.l.b16 %v1081
  %v1114 = vunpack.c.l.b16 %v1082
  %v1115 = vunpack.c.l.b16 %v1083
  %v1116 = vunpack.c.l.b16 %v1084
  %v1117 = vunpack.c.l.b16 %v1085
  %v1118 = vunpack.c.l.b16 %v1086
  %v1119 = vunpack.c.l.b16 %v1087
  %v1120 = vpack.c.b16 %v1105, %v1104
  %v1121 = vpack.c.b16 %v1107, %v1106
  %v1122 = vpack.c.b16 %v1109, %v1108
  %v1123 = vpack.c.b16 %v1111, %v1110
  %v1124 = vpack.c.b16 %v1113, %v1112
  %v1125 = vpack.c.b16 %v1115, %v1114
  %v1126 = vpack.c.b16 %v1117, %v1116
  %v1127 = vpack.c.b16 %v1119, %v1118
  %1136 = vmatprep.subr.bf16.mxu0 0
  %1137 = vmatpush1.bf16.msra.mxu0 %v1127
  %1138 = vmatprep.subr.bf16.mxu0 0
  %1139 = vmatpush1.bf16.msra.mxu0 %v1126
  %1140 = vmatprep.subr.bf16.mxu0 0
  %1141 = vmatpush1.bf16.msra.mxu0 %v1125
  %1142 = vmatprep.subr.bf16.mxu0 0
  %1143 = vmatpush1.bf16.msra.mxu0 %v1124
  %1144 = vmatprep.subr.bf16.mxu0 0
  %1145 = vmatpush1.bf16.msra.mxu0 %v1123
  %1146 = vmatprep.subr.bf16.mxu0 0
  %1147 = vmatpush1.bf16.msra.mxu0 %v1122
  %1148 = vmatprep.subr.bf16.mxu0 0
  %1149 = vmatpush1.bf16.msra.mxu0 %v1121
  %1150 = vmatprep.subr.bf16.mxu0 0
  %1151 = vmatpush1.bf16.msra.mxu0 %v1120
  %1152 = vmatprep.subr.bf16.mxu0 0
  %1153 = vmatpush2.bf16.msra.mxu0 0
  %1154 = vmatprep.subr.bf16.mxu0 0
  %1155 = vmatpush2.bf16.msra.mxu0 0
  %1156 = vmatprep.subr.bf16.mxu0 0
  %1157 = vmatpush2.bf16.msra.mxu0 0
  %1158 = vmatprep.subr.bf16.mxu0 0
  %1159 = vmatpush2.bf16.msra.mxu0 0
  %1160 = vmatprep.subr.bf16.mxu0 0
  %1161 = vmatpush2.bf16.msra.mxu0 0
  %1162 = vmatprep.subr.bf16.mxu0 0
  %1163 = vmatpush2.bf16.msra.mxu0 0
  %1164 = vmatprep.subr.bf16.mxu0 0
  %1165 = vmatpush2.bf16.msra.mxu0 0
  %1166 = vmatprep.subr.bf16.mxu0 0
  %1167 = vmatpush2.bf16.msra.mxu0 0
  %1168 = vmatprep.mubr.bf16.mxu0 0
  %1169 = vmatmul.mubr.bf16.gmra.mxu0 %v1070
  %v1170 = vpop.f32.mrf.mxu0
  %v1171 = vadd.f32 0.0, %v1170
  %v1172 = vpop.f32.mrf.mxu0
  %v1173 = vpop.f32.mrf.mxu0
  %v1174 = vpop.f32.mrf.mxu0
  %1175 = vdwg.mxu0
  %v1176 = vadd.f32 %v1045, %v1171
  %v1177 = vadd.f32 %v727, %v715
  %v1178 = vadd.f32 %v1177, %v770
  %v1179 = vadd.f32 %v1178, %v778
  %1180 = vadd.xlane.f32.xlu0 %v1179
  %v1181 = vpop.xlane.xlu0 %1180
  %v1182 = vmul.f32 %v1181, %v803
  %v1183 = vmul.f32 %v1179, %v1179
  %1184 = vadd.xlane.f32.xlu0 %v1183
  %v1185 = vpop.xlane.xlu0 %1184
  %v1186 = vmul.f32 %v1185, %v803
  %v1187 = vmul.f32 %v1182, %v1182
  %v1188 = vsub.f32 %v1186, %v1187
  %v1189 = vmax.f32 %v1188, 0.0
  %v1190 = vsub.f32 %v1179, %v1182
  %v1191 = vadd.f32 %v1189, 1e-05
  %v1192 = vrsqrt.pop %v1191
  %v1193 = vmul.f32 %v1190, %v1192
  %v1194 = vmul.f32 %v1193, %v789
  %v1195 = vadd.f32 %v1194, %v796
  %v1196 = vmax.f32 %v1195, 0.0
  %v1197 = vpack.c.bf16 %v1196, %v1196
  %s1198 = scalar_lea.vmem %s3, 192
  %v1199 = vld [vmem:[%s1198] sm:$0xf]
  %v1200 = vld [vmem:[%s1198 + $0x4] sm:$0xf]
  %v1201 = vld [vmem:[%s1198 + $0x8] sm:$0xf]
  %v1202 = vld [vmem:[%s1198 + $0xc] sm:$0xf]
  %v1203 = vld [vmem:[%s1198 + $0x10] sm:$0xf]
  %v1204 = vld [vmem:[%s1198 + $0x14] sm:$0xf]
  %v1205 = vld [vmem:[%s1198 + $0x18] sm:$0xf]
  %v1206 = vld [vmem:[%s1198 + $0x1c] sm:$0xf]
  %v1207 = vld [vmem:[%s1198 + $0x20] sm:$0xf]
  %v1208 = vld [vmem:[%s1198 + $0x24] sm:$0xf]
  %v1209 = vld [vmem:[%s1198 + $0x28] sm:$0xf]
  %v1210 = vld [vmem:[%s1198 + $0x2c] sm:$0xf]
  %v1211 = vld [vmem:[%s1198 + $0x30] sm:$0xf]
  %v1212 = vld [vmem:[%s1198 + $0x34] sm:$0xf]
  %v1213 = vld [vmem:[%s1198 + $0x38] sm:$0xf]
  %v1214 = vld [vmem:[%s1198 + $0x3c] sm:$0xf]
  %v1231 = vunpack.c.l.b16 %v1199
  %v1232 = vunpack.c.l.b16 %v1200
  %v1233 = vunpack.c.l.b16 %v1201
  %v1234 = vunpack.c.l.b16 %v1202
  %v1235 = vunpack.c.l.b16 %v1203
  %v1236 = vunpack.c.l.b16 %v1204
  %v1237 = vunpack.c.l.b16 %v1205
  %v1238 = vunpack.c.l.b16 %v1206
  %v1239 = vunpack.c.l.b16 %v1207
  %v1240 = vunpack.c.l.b16 %v1208
  %v1241 = vunpack.c.l.b16 %v1209
  %v1242 = vunpack.c.l.b16 %v1210
  %v1243 = vunpack.c.l.b16 %v1211
  %v1244 = vunpack.c.l.b16 %v1212
  %v1245 = vunpack.c.l.b16 %v1213
  %v1246 = vunpack.c.l.b16 %v1214
  %v1247 = vpack.c.b16 %v1232, %v1231
  %v1248 = vpack.c.b16 %v1234, %v1233
  %v1249 = vpack.c.b16 %v1236, %v1235
  %v1250 = vpack.c.b16 %v1238, %v1237
  %v1251 = vpack.c.b16 %v1240, %v1239
  %v1252 = vpack.c.b16 %v1242, %v1241
  %v1253 = vpack.c.b16 %v1244, %v1243
  %v1254 = vpack.c.b16 %v1246, %v1245
  %1263 = vmatprep.subr.bf16.mxu0 0
  %1264 = vmatpush1.bf16.msra.mxu0 %v1254
  %1265 = vmatprep.subr.bf16.mxu0 0
  %1266 = vmatpush1.bf16.msra.mxu0 %v1253
  %1267 = vmatprep.subr.bf16.mxu0 0
  %1268 = vmatpush1.bf16.msra.mxu0 %v1252
  %1269 = vmatprep.subr.bf16.mxu0 0
  %1270 = vmatpush1.bf16.msra.mxu0 %v1251
  %1271 = vmatprep.subr.bf16.mxu0 0
  %1272 = vmatpush1.bf16.msra.mxu0 %v1250
  %1273 = vmatprep.subr.bf16.mxu0 0
  %1274 = vmatpush1.bf16.msra.mxu0 %v1249
  %1275 = vmatprep.subr.bf16.mxu0 0
  %1276 = vmatpush1.bf16.msra.mxu0 %v1248
  %1277 = vmatprep.subr.bf16.mxu0 0
  %1278 = vmatpush1.bf16.msra.mxu0 %v1247
  %1279 = vmatprep.subr.bf16.mxu0 0
  %1280 = vmatpush2.bf16.msra.mxu0 0
  %1281 = vmatprep.subr.bf16.mxu0 0
  %1282 = vmatpush2.bf16.msra.mxu0 0
  %1283 = vmatprep.subr.bf16.mxu0 0
  %1284 = vmatpush2.bf16.msra.mxu0 0
  %1285 = vmatprep.subr.bf16.mxu0 0
  %1286 = vmatpush2.bf16.msra.mxu0 0
  %1287 = vmatprep.subr.bf16.mxu0 0
  %1288 = vmatpush2.bf16.msra.mxu0 0
  %1289 = vmatprep.subr.bf16.mxu0 0
  %1290 = vmatpush2.bf16.msra.mxu0 0
  %1291 = vmatprep.subr.bf16.mxu0 0
  %1292 = vmatpush2.bf16.msra.mxu0 0
  %1293 = vmatprep.subr.bf16.mxu0 0
  %1294 = vmatpush2.bf16.msra.mxu0 0
  %1295 = vmatprep.mubr.bf16.mxu0 0
  %1296 = vmatmul.mubr.bf16.gmra.mxu0 %v1197
  %v1297 = vpop.f32.mrf.mxu0
  %v1298 = vadd.f32 0.0, %v1297
  %v1299 = vpop.f32.mrf.mxu0
  %v1300 = vpop.f32.mrf.mxu0
  %v1301 = vpop.f32.mrf.mxu0
  %1302 = vdwg.mxu0
  %v1303 = vadd.f32 %v1176, %v1298
  %1304 = vst [vmem:[%s6] sm:$0xff] %v1303
  // Predicated region
  $region26: #{cubes_encoder_c4.1} parent=0 // pred_check
    _
  $region27: #{cubes_encoder_c4.1} parent=0 // pred_check_branch
    %1306 = sbr.rel (0) target = $region29
  $region28: #{cubes_encoder_c4.1} parent=0 // pred_region
    _
  $region29: #{cubes_encoder_c4.1} parent=0 // pred_fallthru
    _
  // Predicated region
  $region30: #{cubes_encoder_c4.1} parent=0 // pred_check
    _
  $region31: #{cubes_encoder_c4.1} parent=0 // pred_check_branch
    %1308 = sbr.rel (0) target = $region33
  $region32: #{cubes_encoder_c4.1} parent=0 // pred_region
    _
  $region33: #{cubes_encoder_c4.1} parent=0 // pred_fallthru
    _

</llo_original>
